<compile_context>
chip_gen: v5e
topology: v5e:2x2
jax: 0.10.0
libtpu: 0.0.40
codegen_flags: <defaults>
</compile_context>

<pallas_src>
import functools

import jax
import jax.numpy as jnp
from jax.experimental import pallas as pl
from jax.experimental.pallas import tpu as pltpu


def _round_up(a: int, b: int) -> int:
    return -(-a // b) * b


# ----------------------------- Pallas kernels -----------------------------

def _matmul_bn_relu_kernel(x_ref, w_ref, s_ref, b_ref, o_ref):
    # (TM, K) @ (K, Cout) on the MXU, fused BN (scale/bias) + ReLU epilogue.
    acc = jnp.dot(x_ref[...], w_ref[...], preferred_element_type=jnp.float32)
    y = acc * s_ref[...] + b_ref[...]
    o_ref[...] = jnp.maximum(y, 0.0).astype(o_ref.dtype)


def _matmul_bn_add_relu_kernel(x_ref, w_ref, s_ref, b_ref, r_ref, o_ref):
    # Same as above, plus fused residual add before the final ReLU.
    acc = jnp.dot(x_ref[...], w_ref[...], preferred_element_type=jnp.float32)
    y = acc * s_ref[...] + b_ref[...] + r_ref[...].astype(jnp.float32)
    o_ref[...] = jnp.maximum(y, 0.0).astype(o_ref.dtype)


def _fused_matmul_bn_relu(x2d, w, scale, bias, residual=None, block_rows=256):
    """relu(x2d @ w * scale + bias [+ residual]) with row-tiled pipelining."""
    m, k = x2d.shape
    kw, cout = w.shape
    assert k == kw
    dtype = x2d.dtype

    # Row tile: pipeline over the (N*H*W) axis; channels stay whole (lane dim).
    tm = min(block_rows, _round_up(m, 8))
    m_pad = _round_up(m, tm)
    if m_pad != m:
        x2d = jnp.pad(x2d, ((0, m_pad - m), (0, 0)))
        if residual is not None:
            residual = jnp.pad(residual, ((0, m_pad - m), (0, 0)))

    scale2d = scale.reshape(1, cout).astype(jnp.float32)
    bias2d = bias.reshape(1, cout).astype(jnp.float32)

    grid = (m_pad // tm,)
    in_specs = [
        pl.BlockSpec((tm, k), lambda i: (i, 0)),        # activations (streamed)
        pl.BlockSpec((k, cout), lambda i: (0, 0)),      # weights (resident)
        pl.BlockSpec((1, cout), lambda i: (0, 0)),      # folded BN scale
        pl.BlockSpec((1, cout), lambda i: (0, 0)),      # folded BN bias
    ]
    args = [x2d, w, scale2d, bias2d]
    kernel = _matmul_bn_relu_kernel
    if residual is not None:
        in_specs.append(pl.BlockSpec((tm, cout), lambda i: (i, 0)))
        args.append(residual)
        kernel = _matmul_bn_add_relu_kernel

    out = pl.pallas_call(
        kernel,
        out_shape=jax.ShapeDtypeStruct((m_pad, cout), dtype),
        grid=grid,
        in_specs=in_specs,
        out_specs=pl.BlockSpec((tm, cout), lambda i: (i, 0)),
        compiler_params=pltpu.CompilerParams(
            dimension_semantics=("parallel",),
            vmem_limit_bytes=32 * 1024 * 1024,
        ),
    )(*args)

    if m_pad != m:
        out = out[:m]
    return out


# ------------------------------ host wrapper -------------------------------

def _im2col_3x3(x_nhwc, stride):
    """3x3, pad=1 patches -> (N*Ho*Wo, 9*C), ordered (kh, kw, c)."""
    n, h, w, c = x_nhwc.shape
    xp = jnp.pad(x_nhwc, ((0, 0), (1, 1), (1, 1), (0, 0)))
    ho = (h + 2 - 3) // stride + 1
    wo = (w + 2 - 3) // stride + 1
    cols = []
    for kh in range(3):
        for kw in range(3):
            cols.append(
                jax.lax.slice(
                    xp,
                    (0, kh, kw, 0),
                    (n, kh + (ho - 1) * stride + 1,
                     kw + (wo - 1) * stride + 1, c),
                    (1, stride, stride, 1),
                )
            )
    patches = jnp.concatenate(cols, axis=-1)  # (N, Ho, Wo, 9C)
    return patches.reshape(n * ho * wo, 9 * c), ho, wo


@functools.partial(jax.jit, static_argnames=("stride",))
def bottleneck_forward(x_nchw, w1, s1, b1, w2, s2, b2, w3, s3, b3, stride=1):
    """Bottleneck forward (downsample=None). x: NCHW float32."""
    n, cin, h, w = x_nchw.shape
    planes = w1.shape[1]
    cout = w3.shape[1]
    # downsample is None => identity residual requires these:
    assert stride == 1 and cin == cout, "identity residual needs stride=1, cin==planes*4"

    x_nhwc = jnp.transpose(x_nchw, (0, 2, 3, 1))          # channels-last (lane dim)

    # conv1 (1x1) + bn1 + relu
    h1 = _fused_matmul_bn_relu(x_nhwc.reshape(n * h * w, cin), w1, s1, b1)
    h1 = h1.reshape(n, h, w, planes)

    # conv2 (3x3, stride, pad=1) + bn2 + relu  (im2col -> fused GEMM)
    patches, ho, wo = _im2col_3x3(h1, stride)
    h2 = _fused_matmul_bn_relu(patches, w2.reshape(9 * planes, planes), s2, b2)

    # conv3 (1x1) + bn3 + residual add + relu (all fused in one kernel)
    residual = x_nhwc.reshape(n * h * w, cin)
    out = _fused_matmul_bn_relu(h2, w3, s3, b3, residual=residual)
    out = out.reshape(n, ho, wo, cout)
    return jnp.transpose(out, (0, 3, 1, 2))               # back to NCHW


# ------------------------------ pure-JAX ref --------------------------------

def bottleneck_reference(x_nchw, w1, s1, b1, w2, s2, b2, w3, s3, b3, stride=1):
    dn = ("NHWC", "HWIO", "NHWC")
    hp = jax.lax.Precision.HIGHEST
    x = jnp.transpose(x_nchw, (0, 2, 3, 1))
    h = jax.lax.conv_general_dilated(x, w1[None, None], (1, 1), "VALID",
                                     dimension_numbers=dn, precision=hp)
    h = jnp.maximum(h * s1 + b1, 0.0)
    h = jax.lax.conv_general_dilated(h, w2, (stride, stride), ((1, 1), (1, 1)),
                                     dimension_numbers=dn, precision=hp)
    h = jnp.maximum(h * s2 + b2, 0.0)
    h = jax.lax.conv_general_dilated(h, w3[None, None], (1, 1), "VALID",
                                     dimension_numbers=dn, precision=hp)
    h = jnp.maximum(h * s3 + b3 + x, 0.0)
    return jnp.transpose(h, (0, 3, 1, 2))


# ---------------------------------- main ------------------------------------

if __name__ == "__main__":
    key = jax.random.PRNGKey(0)
    keys = jax.random.split(key, 8)

    # Small shapes consistent with the module: planes=4, inplanes=planes*4=16
    # (so the identity residual is shape-compatible, as in the PyTorch module
    # with downsample=None), batch=2, spatial=16.
    n, planes, h, w = 2, 4, 16, 16
    inplanes = planes * 4
    stride = 1

    x = jax.random.normal(keys[0], (n, inplanes, h, w), jnp.float32)

    w1 = 0.2 * jax.random.normal(keys[1], (inplanes, planes), jnp.float32)
    w2 = 0.2 * jax.random.normal(keys[2], (3, 3, planes, planes), jnp.float32)
    w3 = 0.2 * jax.random.normal(keys[3], (planes, planes * 4), jnp.float32)

    def bn_fold(k, c):
        k1, k2, k3, k4 = jax.random.split(k, 4)
        gamma = 1.0 + 0.1 * jax.random.normal(k1, (c,), jnp.float32)
        beta = 0.1 * jax.random.normal(k2, (c,), jnp.float32)
        rmean = 0.1 * jax.random.normal(k3, (c,), jnp.float32)
        rvar = jax.random.uniform(k4, (c,), jnp.float32, 0.5, 1.5)
        eps = 1e-5
        s = gamma / jnp.sqrt(rvar + eps)
        b = beta - rmean * s
        return s, b

    s1, b1 = bn_fold(keys[4], planes)
    s2, b2 = bn_fold(keys[5], planes)
    s3, b3 = bn_fold(keys[6], planes * 4)

    out = bottleneck_forward(x, w1, s1, b1, w2, s2, b2, w3, s3, b3, stride=stride)
    jax.block_until_ready(out)

    ref = bottleneck_reference(x, w1, s1, b1, w2, s2, b2, w3, s3, b3, stride=stride)

    assert out.shape == (n, planes * 4, h, w) and out.dtype == x.dtype
    assert jnp.allclose(out, ref, rtol=1e-3, atol=1e-3), "mismatch vs reference"

    print("KERNEL_OK")
</pallas_src>

<mosaic_0001>
module attributes {stable_mosaic.version = 11 : i64} {
  func.func @_matmul_bn_relu_kernel(%arg0: i32, %arg1: memref<256x16xf32, #tpu.memory_space<vmem>>, %arg2: memref<16x4xf32, #tpu.memory_space<vmem>>, %arg3: memref<1x4xf32, #tpu.memory_space<vmem>>, %arg4: memref<1x4xf32, #tpu.memory_space<vmem>>, %arg5: memref<256x4xf32, #tpu.memory_space<vmem>>) attributes {dimension_semantics = [#tpu.dimension_semantics<parallel>], iteration_bounds = array<i64: 2>, scalar_prefetch = 0 : i64, scratch_operands = 0 : i64, tpu.core_type = #tpu.core_type<tc>, window_params = [{transform_indices = @transform_0, window_bounds = array<i64: 256, 16>}, {pipeline_mode = #tpu.pipeline_mode<synchronous>, transform_indices = @transform_1, window_bounds = array<i64: 16, 4>}, {pipeline_mode = #tpu.pipeline_mode<synchronous>, transform_indices = @transform_2, window_bounds = array<i64: 1, 4>}, {pipeline_mode = #tpu.pipeline_mode<synchronous>, transform_indices = @transform_3, window_bounds = array<i64: 1, 4>}, {transform_indices = @transform_4, window_bounds = array<i64: 256, 4>}]} {
    %c0 = arith.constant 0 : index
    %c0_0 = arith.constant 0 : index
    %0 = vector.load %arg1[%c0, %c0_0] : memref<256x16xf32, #tpu.memory_space<vmem>>, vector<256x16xf32>
    %c0_1 = arith.constant 0 : index
    %c0_2 = arith.constant 0 : index
    %1 = vector.load %arg2[%c0_1, %c0_2] : memref<16x4xf32, #tpu.memory_space<vmem>>, vector<16x4xf32>
    %cst = arith.constant dense<0.000000e+00> : vector<256x4xf32>
    %2 = tpu.matmul %0, %1, %cst {dimension_numbers = #tpu.dot_dimension_numbers<[1], [0], [0], [1], [0, 0, 1, 1], [], []>} : vector<256x16xf32>, vector<16x4xf32>, vector<256x4xf32> -> vector<256x4xf32>
    %c0_3 = arith.constant 0 : index
    %c0_4 = arith.constant 0 : index
    %3 = vector.load %arg3[%c0_3, %c0_4] : memref<1x4xf32, #tpu.memory_space<vmem>>, vector<1x4xf32>
    %4 = vector.broadcast %3 : vector<1x4xf32> to vector<256x4xf32>
    %5 = arith.mulf %2, %4 : vector<256x4xf32>
    %c0_5 = arith.constant 0 : index
    %c0_6 = arith.constant 0 : index
    %6 = vector.load %arg4[%c0_5, %c0_6] : memref<1x4xf32, #tpu.memory_space<vmem>>, vector<1x4xf32>
    %7 = vector.broadcast %6 : vector<1x4xf32> to vector<256x4xf32>
    %8 = arith.addf %5, %7 : vector<256x4xf32>
    %cst_7 = arith.constant 0.000000e+00 : f32
    %9 = vector.broadcast %cst_7 : f32 to vector<256x4xf32>
    %10 = arith.maximumf %8, %9 : vector<256x4xf32>
    %c0_8 = arith.constant 0 : index
    %c0_9 = arith.constant 0 : index
    %11 = vector.load %arg5[%c0_8, %c0_9] : memref<256x4xf32, #tpu.memory_space<vmem>>, vector<256x4xf32>
    tpu.vector_store %arg5[%c0_8, %c0_9], %10 {strides = array<i32>} : memref<256x4xf32, #tpu.memory_space<vmem>>, vector<256x4xf32>,
    return
  }
  func.func @transform_0(%arg0: i32) -> (i32, i32) {
    %c0_i32 = arith.constant 0 : i32
    %c0_i32_0 = arith.constant 0 : i32
    return %arg0, %c0_i32 : i32, i32
  }
  func.func @transform_1(%arg0: i32) -> (i32, i32) {
    %c0_i32 = arith.constant 0 : i32
    %c0_i32_0 = arith.constant 0 : i32
    %c0_i32_1 = arith.constant 0 : i32
    return %c0_i32, %c0_i32_0 : i32, i32
  }
  func.func @transform_2(%arg0: i32) -> (i32, i32) {
    %c0_i32 = arith.constant 0 : i32
    %c0_i32_0 = arith.constant 0 : i32
    %c0_i32_1 = arith.constant 0 : i32
    return %c0_i32, %c0_i32_0 : i32, i32
  }
  func.func @transform_3(%arg0: i32) -> (i32, i32) {
    %c0_i32 = arith.constant 0 : i32
    %c0_i32_0 = arith.constant 0 : i32
    %c0_i32_1 = arith.constant 0 : i32
    return %c0_i32, %c0_i32_0 : i32, i32
  }
  func.func @transform_4(%arg0: i32) -> (i32, i32) {
    %c0_i32 = arith.constant 0 : i32
    %c0_i32_0 = arith.constant 0 : i32
    return %arg0, %c0_i32 : i32, i32
  }
}

module attributes {stable_mosaic.version = 11 : i64} {
  func.func @_matmul_bn_relu_kernel(%arg0: i32, %arg1: memref<256x36xf32, #tpu.memory_space<vmem>>, %arg2: memref<36x4xf32, #tpu.memory_space<vmem>>, %arg3: memref<1x4xf32, #tpu.memory_space<vmem>>, %arg4: memref<1x4xf32, #tpu.memory_space<vmem>>, %arg5: memref<256x4xf32, #tpu.memory_space<vmem>>) attributes {dimension_semantics = [#tpu.dimension_semantics<parallel>], iteration_bounds = array<i64: 2>, scalar_prefetch = 0 : i64, scratch_operands = 0 : i64, tpu.core_type = #tpu.core_type<tc>, window_params = [{transform_indices = @transform_0, window_bounds = array<i64: 256, 36>}, {pipeline_mode = #tpu.pipeline_mode<synchronous>, transform_indices = @transform_1, window_bounds = array<i64: 36, 4>}, {pipeline_mode = #tpu.pipeline_mode<synchronous>, transform_indices = @transform_2, window_bounds = array<i64: 1, 4>}, {pipeline_mode = #tpu.pipeline_mode<synchronous>, transform_indices = @transform_3, window_bounds = array<i64: 1, 4>}, {transform_indices = @transform_4, window_bounds = array<i64: 256, 4>}]} {
    %c0 = arith.constant 0 : index
    %c0_0 = arith.constant 0 : index
    %0 = vector.load %arg1[%c0, %c0_0] : memref<256x36xf32, #tpu.memory_space<vmem>>, vector<256x36xf32>
    %c0_1 = arith.constant 0 : index
    %c0_2 = arith.constant 0 : index
    %1 = vector.load %arg2[%c0_1, %c0_2] : memref<36x4xf32, #tpu.memory_space<vmem>>, vector<36x4xf32>
    %cst = arith.constant dense<0.000000e+00> : vector<256x4xf32>
    %2 = tpu.matmul %0, %1, %cst {dimension_numbers = #tpu.dot_dimension_numbers<[1], [0], [0], [1], [0, 0, 1, 1], [], []>} : vector<256x36xf32>, vector<36x4xf32>, vector<256x4xf32> -> vector<256x4xf32>
    %c0_3 = arith.constant 0 : index
    %c0_4 = arith.constant 0 : index
    %3 = vector.load %arg3[%c0_3, %c0_4] : memref<1x4xf32, #tpu.memory_space<vmem>>, vector<1x4xf32>
    %4 = vector.broadcast %3 : vector<1x4xf32> to vector<256x4xf32>
    %5 = arith.mulf %2, %4 : vector<256x4xf32>
    %c0_5 = arith.constant 0 : index
    %c0_6 = arith.constant 0 : index
    %6 = vector.load %arg4[%c0_5, %c0_6] : memref<1x4xf32, #tpu.memory_space<vmem>>, vector<1x4xf32>
    %7 = vector.broadcast %6 : vector<1x4xf32> to vector<256x4xf32>
    %8 = arith.addf %5, %7 : vector<256x4xf32>
    %cst_7 = arith.constant 0.000000e+00 : f32
    %9 = vector.broadcast %cst_7 : f32 to vector<256x4xf32>
    %10 = arith.maximumf %8, %9 : vector<256x4xf32>
    %c0_8 = arith.constant 0 : index
    %c0_9 = arith.constant 0 : index
    %11 = vector.load %arg5[%c0_8, %c0_9] : memref<256x4xf32, #tpu.memory_space<vmem>>, vector<256x4xf32>
    tpu.vector_store %arg5[%c0_8, %c0_9], %10 {strides = array<i32>} : memref<256x4xf32, #tpu.memory_space<vmem>>, vector<256x4xf32>,
    return
  }
  func.func @transform_0(%arg0: i32) -> (i32, i32) {
    %c0_i32 = arith.constant 0 : i32
    %c0_i32_0 = arith.constant 0 : i32
    return %arg0, %c0_i32 : i32, i32
  }
  func.func @transform_1(%arg0: i32) -> (i32, i32) {
    %c0_i32 = arith.constant 0 : i32
    %c0_i32_0 = arith.constant 0 : i32
    %c0_i32_1 = arith.constant 0 : i32
    return %c0_i32, %c0_i32_0 : i32, i32
  }
  func.func @transform_2(%arg0: i32) -> (i32, i32) {
    %c0_i32 = arith.constant 0 : i32
    %c0_i32_0 = arith.constant 0 : i32
    %c0_i32_1 = arith.constant 0 : i32
    return %c0_i32, %c0_i32_0 : i32, i32
  }
  func.func @transform_3(%arg0: i32) -> (i32, i32) {
    %c0_i32 = arith.constant 0 : i32
    %c0_i32_0 = arith.constant 0 : i32
    %c0_i32_1 = arith.constant 0 : i32
    return %c0_i32, %c0_i32_0 : i32, i32
  }
  func.func @transform_4(%arg0: i32) -> (i32, i32) {
    %c0_i32 = arith.constant 0 : i32
    %c0_i32_0 = arith.constant 0 : i32
    return %arg0, %c0_i32 : i32, i32
  }
}

module attributes {stable_mosaic.version = 11 : i64} {
  func.func @_matmul_bn_add_relu_kernel(%arg0: i32, %arg1: memref<256x4xf32, #tpu.memory_space<vmem>>, %arg2: memref<4x16xf32, #tpu.memory_space<vmem>>, %arg3: memref<1x16xf32, #tpu.memory_space<vmem>>, %arg4: memref<1x16xf32, #tpu.memory_space<vmem>>, %arg5: memref<256x16xf32, #tpu.memory_space<vmem>>, %arg6: memref<256x16xf32, #tpu.memory_space<vmem>>) attributes {dimension_semantics = [#tpu.dimension_semantics<parallel>], iteration_bounds = array<i64: 2>, scalar_prefetch = 0 : i64, scratch_operands = 0 : i64, tpu.core_type = #tpu.core_type<tc>, window_params = [{transform_indices = @transform_0, window_bounds = array<i64: 256, 4>}, {pipeline_mode = #tpu.pipeline_mode<synchronous>, transform_indices = @transform_1, window_bounds = array<i64: 4, 16>}, {pipeline_mode = #tpu.pipeline_mode<synchronous>, transform_indices = @transform_2, window_bounds = array<i64: 1, 16>}, {pipeline_mode = #tpu.pipeline_mode<synchronous>, transform_indices = @transform_3, window_bounds = array<i64: 1, 16>}, {transform_indices = @transform_4, window_bounds = array<i64: 256, 16>}, {transform_indices = @transform_5, window_bounds = array<i64: 256, 16>}]} {
    %c0 = arith.constant 0 : index
    %c0_0 = arith.constant 0 : index
    %0 = vector.load %arg1[%c0, %c0_0] : memref<256x4xf32, #tpu.memory_space<vmem>>, vector<256x4xf32>
    %c0_1 = arith.constant 0 : index
    %c0_2 = arith.constant 0 : index
    %1 = vector.load %arg2[%c0_1, %c0_2] : memref<4x16xf32, #tpu.memory_space<vmem>>, vector<4x16xf32>
    %cst = arith.constant dense<0.000000e+00> : vector<256x16xf32>
    %2 = tpu.matmul %0, %1, %cst {dimension_numbers = #tpu.dot_dimension_numbers<[1], [0], [0], [1], [0, 0, 1, 1], [], []>} : vector<256x4xf32>, vector<4x16xf32>, vector<256x16xf32> -> vector<256x16xf32>
    %c0_3 = arith.constant 0 : index
    %c0_4 = arith.constant 0 : index
    %3 = vector.load %arg3[%c0_3, %c0_4] : memref<1x16xf32, #tpu.memory_space<vmem>>, vector<1x16xf32>
    %4 = vector.broadcast %3 : vector<1x16xf32> to vector<256x16xf32>
    %5 = arith.mulf %2, %4 : vector<256x16xf32>
    %c0_5 = arith.constant 0 : index
    %c0_6 = arith.constant 0 : index
    %6 = vector.load %arg4[%c0_5, %c0_6] : memref<1x16xf32, #tpu.memory_space<vmem>>, vector<1x16xf32>
    %7 = vector.broadcast %6 : vector<1x16xf32> to vector<256x16xf32>
    %8 = arith.addf %5, %7 : vector<256x16xf32>
    %c0_7 = arith.constant 0 : index
    %c0_8 = arith.constant 0 : index
    %9 = vector.load %arg5[%c0_7, %c0_8] : memref<256x16xf32, #tpu.memory_space<vmem>>, vector<256x16xf32>
    %10 = arith.addf %8, %9 : vector<256x16xf32>
    %cst_9 = arith.constant 0.000000e+00 : f32
    %11 = vector.broadcast %cst_9 : f32 to vector<256x16xf32>
    %12 = arith.maximumf %10, %11 : vector<256x16xf32>
    %c0_10 = arith.constant 0 : index
    %c0_11 = arith.constant 0 : index
    %13 = vector.load %arg6[%c0_10, %c0_11] : memref<256x16xf32, #tpu.memory_space<vmem>>, vector<256x16xf32>
    tpu.vector_store %arg6[%c0_10, %c0_11], %12 {strides = array<i32>} : memref<256x16xf32, #tpu.memory_space<vmem>>, vector<256x16xf32>,
    return
  }
  func.func @transform_0(%arg0: i32) -> (i32, i32) {
    %c0_i32 = arith.constant 0 : i32
    %c0_i32_0 = arith.constant 0 : i32
    return %arg0, %c0_i32 : i32, i32
  }
  func.func @transform_1(%arg0: i32) -> (i32, i32) {
    %c0_i32 = arith.constant 0 : i32
    %c0_i32_0 = arith.constant 0 : i32
    %c0_i32_1 = arith.constant 0 : i32
    return %c0_i32, %c0_i32_0 : i32, i32
  }
  func.func @transform_2(%arg0: i32) -> (i32, i32) {
    %c0_i32 = arith.constant 0 : i32
    %c0_i32_0 = arith.constant 0 : i32
    %c0_i32_1 = arith.constant 0 : i32
    return %c0_i32, %c0_i32_0 : i32, i32
  }
  func.func @transform_3(%arg0: i32) -> (i32, i32) {
    %c0_i32 = arith.constant 0 : i32
    %c0_i32_0 = arith.constant 0 : i32
    %c0_i32_1 = arith.constant 0 : i32
    return %c0_i32, %c0_i32_0 : i32, i32
  }
  func.func @transform_4(%arg0: i32) -> (i32, i32) {
    %c0_i32 = arith.constant 0 : i32
    %c0_i32_0 = arith.constant 0 : i32
    return %arg0, %c0_i32 : i32, i32
  }
  func.func @transform_5(%arg0: i32) -> (i32, i32) {
    %c0_i32 = arith.constant 0 : i32
    %c0_i32_0 = arith.constant 0 : i32
    return %arg0, %c0_i32 : i32, i32
  }
}

</mosaic_0001>

<llo_original>
// kernel: bottleneck_forward.3
$region0: #{bottleneck_forward.3}
  #allocation0 [shape = 'u32[]', space=smem, size = 0x4, offset = 0x4, fixed_abs, tag = 'smem constant byte address 0x4 - core index']
  #allocation1 [shape = 'u32[72,128]{1,0:T(1,128)}', space=vmem, size = 0x9000, scoped, tag = 'internal scratch']
  %s0 = inlined_call_operand.vmem [shape: f32[512,16], index: 0, kind: input, shape index: {}]
  %s1 = inlined_call_operand.vmem [shape: f32[16,4], index: 1, kind: input, shape index: {}]
  %s2 = inlined_call_operand.vmem [shape: f32[1,4], index: 2, kind: input, shape index: {}]
  %s3 = inlined_call_operand.vmem [shape: f32[1,4], index: 3, kind: input, shape index: {}]
  %s4 = inlined_call_operand.vmem [shape: f32[512,4], index: 4, kind: output, shape index: {}]
  %s5 = sld [smem:[#allocation0]]
  $region49: #{bottleneck_forward.3} parent=0
    _
  %s7 = ssub.s32 1, %s5
  %s8 = scalar_select 0, %s7, %s5
  loop: start=0, step=1, limit=4
  $region2: #{bottleneck_forward.3} parent=0 // loop_pre_header
    _
  $region3: #{bottleneck_forward.3} parent=0 // loop_header
    %s10 = sphi 0, %s14
    %p11 = scmp.ge.s32.totalorder %s10, 4
    %s20 = sphi 0, %s22
    %s23 = sphi 0, %s20
    %s24 = sphi 0, %s23
    %s40 = sphi 0, %s24
    %s44 = sphi 0, %s44
    %s46 = sphi 0, %s44
    %s47 = sphi 0, %s46
    %s61 = sphi 0, %s47
    %s65 = sphi 0, %s65
    %s67 = sphi 0, %s65
    %s68 = sphi 0, %s67
    %s82 = sphi 0, %s68
    %s86 = sphi 0, %s86
    %s88 = sphi 0, %s86
    %s89 = sphi 0, %s88
    %s103 = sphi 0, %s89
    %s109 = sphi 0, %s111
    %s112 = sphi 0, %s109
    %s113 = sphi 0, %s112
    %s129 = sphi 0, %s113
  $region4: #{bottleneck_forward.3} parent=0 // loop_header_branch
    %13 = sbr.rel (%p11) target = $region8
  $region5: #{bottleneck_forward.3} parent=0 // loop_body
    %s15 = ssub.s32 %s10, 1
    %s16 = ssub.s32 %s10, 2
    %s17 = sadd.s32 %s10, 1
    %s18 = ssub.s32 %s10, %s17
    %p19 = scmp.eq.s32.totalorder %s18, 0
    %s21 = sadd.s32 %s20, 1
    %s22 = scalar_select %p19, %s20, %s21
    %p25 = pneg %p19
    %p26 = scmp.eq.s32.totalorder %s10, 1
    %p27 = por %p25, %p26
    %p28 = scmp.ne.s32.totalorder %s20, %s23
    %p29 = scmp.eq.s32.totalorder %s10, 0
    %p30 = por %p28, %p29
    %p31 = scmp.ne.s32.totalorder %s20, %s23
    %p32 = scmp.eq.s32.totalorder %s15, 1
    %p33 = por %p31, %p32
    %p34 = scmp.ne.s32.totalorder %s23, %s24
    %p35 = scmp.eq.s32.totalorder %s15, 0
    %p36 = por %p34, %p35
    %p37 = scmp.ne.s32.totalorder %s23, %s24
    %p38 = scmp.eq.s32.totalorder %s16, 1
    %p39 = por %p37, %p38
    %p41 = scmp.ne.s32.totalorder %s24, %s40
    %p42 = scmp.eq.s32.totalorder %s16, 0
    %p43 = por %p41, %p42
    %s45 = sadd.s32 %s44, 1
    %p48 = scmp.eq.s32.totalorder %s10, 1
    %p49 = scmp.ne.s32.totalorder %s44, %s46
    %p50 = scmp.eq.s32.totalorder %s10, 0
    %p51 = por %p49, %p50
    %p52 = scmp.ne.s32.totalorder %s44, %s46
    %p53 = scmp.eq.s32.totalorder %s15, 1
    %p54 = por %p52, %p53
    %p55 = scmp.ne.s32.totalorder %s46, %s47
    %p56 = scmp.eq.s32.totalorder %s15, 0
    %p57 = por %p55, %p56
    %p58 = scmp.ne.s32.totalorder %s46, %s47
    %p59 = scmp.eq.s32.totalorder %s16, 1
    %p60 = por %p58, %p59
    %p62 = scmp.ne.s32.totalorder %s47, %s61
    %p63 = scmp.eq.s32.totalorder %s16, 0
    %p64 = por %p62, %p63
    %s66 = sadd.s32 %s65, 1
    %p69 = scmp.eq.s32.totalorder %s10, 1
    %p70 = scmp.ne.s32.totalorder %s65, %s67
    %p71 = scmp.eq.s32.totalorder %s10, 0
    %p72 = por %p70, %p71
    %p73 = scmp.ne.s32.totalorder %s65, %s67
    %p74 = scmp.eq.s32.totalorder %s15, 1
    %p75 = por %p73, %p74
    %p76 = scmp.ne.s32.totalorder %s67, %s68
    %p77 = scmp.eq.s32.totalorder %s15, 0
    %p78 = por %p76, %p77
    %p79 = scmp.ne.s32.totalorder %s67, %s68
    %p80 = scmp.eq.s32.totalorder %s16, 1
    %p81 = por %p79, %p80
    %p83 = scmp.ne.s32.totalorder %s68, %s82
    %p84 = scmp.eq.s32.totalorder %s16, 0
    %p85 = por %p83, %p84
    %s87 = sadd.s32 %s86, 1
    %p90 = scmp.eq.s32.totalorder %s10, 1
    %p91 = scmp.ne.s32.totalorder %s86, %s88
    %p92 = scmp.eq.s32.totalorder %s10, 0
    %p93 = por %p91, %p92
    %p94 = scmp.ne.s32.totalorder %s86, %s88
    %p95 = scmp.eq.s32.totalorder %s15, 1
    %p96 = por %p94, %p95
    %p97 = scmp.ne.s32.totalorder %s88, %s89
    %p98 = scmp.eq.s32.totalorder %s15, 0
    %p99 = por %p97, %p98
    %p100 = scmp.ne.s32.totalorder %s88, %s89
    %p101 = scmp.eq.s32.totalorder %s16, 1
    %p102 = por %p100, %p101
    %p104 = scmp.ne.s32.totalorder %s89, %s103
    %p105 = scmp.eq.s32.totalorder %s16, 0
    %p106 = por %p104, %p105
    %s107 = ssub.s32 %s10, %s17
    %p108 = scmp.eq.s32.totalorder %s107, 0
    %s110 = sadd.s32 %s109, 1
    %s111 = scalar_select %p108, %s109, %s110
    %p114 = pneg %p108
    %p115 = scmp.eq.s32.totalorder %s10, 1
    %p116 = por %p114, %p115
    %p117 = scmp.ne.s32.totalorder %s109, %s112
    %p118 = scmp.eq.s32.totalorder %s10, 0
    %p119 = por %p117, %p118
    %p120 = scmp.ne.s32.totalorder %s109, %s112
    %p121 = scmp.eq.s32.totalorder %s15, 1
    %p122 = por %p120, %p121
    %p123 = scmp.ne.s32.totalorder %s112, %s113
    %p124 = scmp.eq.s32.totalorder %s15, 0
    %p125 = por %p123, %p124
    %p126 = scmp.ne.s32.totalorder %s112, %s113
    %p127 = scmp.eq.s32.totalorder %s16, 1
    %p128 = por %p126, %p127
    %p130 = scmp.ne.s32.totalorder %s113, %s129
    %p131 = scmp.eq.s32.totalorder %s16, 0
    %p132 = por %p130, %p131
    %p133 = scmp.le.s32.totalorder 1, %s10
    %p134 = scmp.lt.s32.totalorder %s10, 3
    %p135 = pnand %p133, %p134
    %p136 = pneg %p135
    // Predicated region
    $region9: #{bottleneck_forward.3} parent=5 // pred_check
      _
    $region10: #{bottleneck_forward.3} parent=5 // pred_check_branch
      %138 = sbr.rel (%p135) target = $region12
    $region11: #{bottleneck_forward.3} parent=5 // pred_region
      %s139 = ssub.s32 %s10, 1
      // Predicated region
      $region13: #{bottleneck_forward.3} parent=11 // pred_check
        %p140 = pneg %p57
      $region14: #{bottleneck_forward.3} parent=11 // pred_check_branch
        %142 = sbr.rel (%p140) target = $region16
      $region15: #{bottleneck_forward.3} parent=11 // pred_region
        _
      $region16: #{bottleneck_forward.3} parent=11 // pred_fallthru
        _
      // Predicated region
      $region17: #{bottleneck_forward.3} parent=11 // pred_check
        %p143 = pneg %p78
      $region18: #{bottleneck_forward.3} parent=11 // pred_check_branch
        %145 = sbr.rel (%p143) target = $region20
      $region19: #{bottleneck_forward.3} parent=11 // pred_region
        _
      $region20: #{bottleneck_forward.3} parent=11 // pred_fallthru
        _
      // Predicated region
      $region21: #{bottleneck_forward.3} parent=11 // pred_check
        %p146 = pneg %p99
      $region22: #{bottleneck_forward.3} parent=11 // pred_check_branch
        %148 = sbr.rel (%p146) target = $region24
      $region23: #{bottleneck_forward.3} parent=11 // pred_region
        _
      $region24: #{bottleneck_forward.3} parent=11 // pred_fallthru
        _
    $region12: #{bottleneck_forward.3} parent=5 // pred_fallthru
      _
    %p149 = scmp.lt.s32.totalorder %s10, 2
    // Predicated region
    $region25: #{bottleneck_forward.3} parent=5 // pred_check
      %p150 = pneg %p149
    $region26: #{bottleneck_forward.3} parent=5 // pred_check_branch
      %152 = sbr.rel (%p150) target = $region28
    $region27: #{bottleneck_forward.3} parent=5 // pred_region
      // Predicated region
      $region29: #{bottleneck_forward.3} parent=27 // pred_check
        %p153 = pneg %p30
      $region30: #{bottleneck_forward.3} parent=27 // pred_check_branch
        %155 = sbr.rel (%p153) target = $region32
      $region31: #{bottleneck_forward.3} parent=27 // pred_region
        %s156 = smul.u32 32, %s10
        %p157 = scmp.lt.s32.totalorder %s156, 63
        %s158 = scalar_select %p157, %s156, 63
        %s159 = smul.addr %s158, 8
        %s160 = scalar_lea.vmem %s0, %s159
        %s161 = smul.u32 32, %s10
      $region32: #{bottleneck_forward.3} parent=27 // pred_fallthru
        _
    $region28: #{bottleneck_forward.3} parent=5 // pred_fallthru
      _
    %p162 = scmp.le.s32.totalorder 1, %s10
    %p163 = scmp.lt.s32.totalorder %s10, 3
    %p164 = pnand %p162, %p163
    %p165 = pneg %p164
    // Predicated region
    $region33: #{bottleneck_forward.3} parent=5 // pred_check
      _
    $region34: #{bottleneck_forward.3} parent=5 // pred_check_branch
      %167 = sbr.rel (%p164) target = $region36
    $region35: #{bottleneck_forward.3} parent=5 // pred_region
      %s168 = ssub.s32 %s10, 1
      %s169 = smul.u32 32, %s15
      %p170 = scmp.lt.s32.totalorder %s169, 63
      %s171 = scalar_select %p170, %s169, 63
      %s172 = smul.addr %s171, 8
      %s173 = scalar_lea.vmem %s0, %s172
      %p174 = pneg %p36
      %p175 = pneg %p33
      %p176 = pneg %p57
      %p177 = pneg %p54
      %p178 = pneg %p78
      %p179 = pneg %p75
      %p180 = pneg %p99
      %p181 = pneg %p96
      %p182 = pneg %p125
      %p183 = pneg %p122
      %s184 = smul.u32 32, %s15
      %p185 = scmp.lt.s32.totalorder %s184, 63
      %s186 = scalar_select %p185, %s184, 63
      %s187 = smul.addr %s186, 8
      %s188 = scalar_lea.vmem %s4, %s187
      %s189 = smul.u32 32, %s15
      %p190 = scmp.lt.s32.totalorder %s189, 63
      %s191 = scalar_select %p190, %s189, 63
      %s192 = smul.addr %s191, 8
      %s193 = scalar_lea.vmem %s0, %s192
      %s194 = smul.u32 32, %s15
      %s195 = smul.u32 32, %s15
      %p196 = scmp.lt.s32.totalorder %s195, 63
      %s197 = scalar_select %p196, %s195, 63
      %s198 = smul.addr %s197, 8
      %s199 = scalar_lea.vmem %s4, %s198
      %s200 = smul.u32 32, %s15
      %v201 = vld [vmem:[%s193] sm:$0xff]
      %v202 = vld [vmem:[%s193 + $0x8] sm:$0xff]
      %v203 = vld [vmem:[%s193 + $0x10] sm:$0xff]
      %v204 = vld [vmem:[%s193 + $0x18] sm:$0xff]
      %v205 = vld [vmem:[%s193 + $0x20] sm:$0xff]
      %v206 = vld [vmem:[%s193 + $0x28] sm:$0xff]
      %v207 = vld [vmem:[%s193 + $0x30] sm:$0xff]
      %v208 = vld [vmem:[%s193 + $0x38] sm:$0xff]
      %v209 = vld [vmem:[%s193 + $0x40] sm:$0xff]
      %v210 = vld [vmem:[%s193 + $0x48] sm:$0xff]
      %v211 = vld [vmem:[%s193 + $0x50] sm:$0xff]
      %v212 = vld [vmem:[%s193 + $0x58] sm:$0xff]
      %v213 = vld [vmem:[%s193 + $0x60] sm:$0xff]
      %v214 = vld [vmem:[%s193 + $0x68] sm:$0xff]
      %v215 = vld [vmem:[%s193 + $0x70] sm:$0xff]
      %v216 = vld [vmem:[%s193 + $0x78] sm:$0xff]
      %v217 = vld [vmem:[%s193 + $0x80] sm:$0xff]
      %v218 = vld [vmem:[%s193 + $0x88] sm:$0xff]
      %v219 = vld [vmem:[%s193 + $0x90] sm:$0xff]
      %v220 = vld [vmem:[%s193 + $0x98] sm:$0xff]
      %v221 = vld [vmem:[%s193 + $0xa0] sm:$0xff]
      %v222 = vld [vmem:[%s193 + $0xa8] sm:$0xff]
      %v223 = vld [vmem:[%s193 + $0xb0] sm:$0xff]
      %v224 = vld [vmem:[%s193 + $0xb8] sm:$0xff]
      %v225 = vld [vmem:[%s193 + $0xc0] sm:$0xff]
      %v226 = vld [vmem:[%s193 + $0xc8] sm:$0xff]
      %v227 = vld [vmem:[%s193 + $0xd0] sm:$0xff]
      %v228 = vld [vmem:[%s193 + $0xd8] sm:$0xff]
      %v229 = vld [vmem:[%s193 + $0xe0] sm:$0xff]
      %v230 = vld [vmem:[%s193 + $0xe8] sm:$0xff]
      %v231 = vld [vmem:[%s193 + $0xf0] sm:$0xff]
      %v232 = vld [vmem:[%s193 + $0xf8] sm:$0xff]
      %v233 = vld [vmem:[%s1] sm:$0xff]
      %v234 = vld [vmem:[%s1 + $0x8] sm:$0xff]
      %vm235 = vcmask 130048
      %v237 = vsel %vm235, %v201, 0
      %v240 = vsel %vm235, %v202, 0
      %v243 = vsel %vm235, %v203, 0
      %v246 = vsel %vm235, %v204, 0
      %v249 = vsel %vm235, %v205, 0
      %v252 = vsel %vm235, %v206, 0
      %v255 = vsel %vm235, %v207, 0
      %v258 = vsel %vm235, %v208, 0
      %v261 = vsel %vm235, %v209, 0
      %v264 = vsel %vm235, %v210, 0
      %v267 = vsel %vm235, %v211, 0
      %v270 = vsel %vm235, %v212, 0
      %v273 = vsel %vm235, %v213, 0
      %v276 = vsel %vm235, %v214, 0
      %v279 = vsel %vm235, %v215, 0
      %v282 = vsel %vm235, %v216, 0
      %v285 = vsel %vm235, %v217, 0
      %v288 = vsel %vm235, %v218, 0
      %v291 = vsel %vm235, %v219, 0
      %v294 = vsel %vm235, %v220, 0
      %v297 = vsel %vm235, %v221, 0
      %v300 = vsel %vm235, %v222, 0
      %v303 = vsel %vm235, %v223, 0
      %v306 = vsel %vm235, %v224, 0
      %v309 = vsel %vm235, %v225, 0
      %v312 = vsel %vm235, %v226, 0
      %v315 = vsel %vm235, %v227, 0
      %v318 = vsel %vm235, %v228, 0
      %v321 = vsel %vm235, %v229, 0
      %v324 = vsel %vm235, %v230, 0
      %v327 = vsel %vm235, %v231, 0
      %v330 = vsel %vm235, %v232, 0
      %332 = vmatpush.msra.mxu0 0.0
      %333 = vmatpush.msra.mxu0 0.0
      %334 = vmatpush.msra.mxu0 0.0
      %335 = vmatpush.msra.mxu0 0.0
      %336 = vmatpush.msra.mxu0 0.0
      %337 = vmatpush.msra.mxu0 0.0
      %338 = vmatpush.msra.mxu0 0.0
      %339 = vmatpush.msra.mxu0 0.0
      %340 = vmatpush.msra.mxu0 0.0
      %341 = vmatpush.msra.mxu0 0.0
      %342 = vmatpush.msra.mxu0 0.0
      %343 = vmatpush.msra.mxu0 0.0
      %344 = vmatpush.msra.mxu0 0.0
      %345 = vmatpush.msra.mxu0 0.0
      %346 = vmatpush.msra.mxu0 %v234
      %347 = vmatpush.msra.mxu0 %v233
      %348 = vmatmul.f32.gmra.mxu0 %v237
      %v349 = vpop.f32.mrf.mxu0
      %v350 = vadd.f32 0.0, %v349
      %351 = vmatmul.f32.gmra.mxu0 %v240
      %v352 = vpop.f32.mrf.mxu0
      %v353 = vadd.f32 0.0, %v352
      %354 = vmatmul.f32.gmra.mxu0 %v243
      %v355 = vpop.f32.mrf.mxu0
      %v356 = vadd.f32 0.0, %v355
      %357 = vmatmul.f32.gmra.mxu0 %v246
      %v358 = vpop.f32.mrf.mxu0
      %v359 = vadd.f32 0.0, %v358
      %360 = vmatmul.f32.gmra.mxu0 %v249
      %v361 = vpop.f32.mrf.mxu0
      %v362 = vadd.f32 0.0, %v361
      %363 = vmatmul.f32.gmra.mxu0 %v252
      %v364 = vpop.f32.mrf.mxu0
      %v365 = vadd.f32 0.0, %v364
      %366 = vmatmul.f32.gmra.mxu0 %v255
      %v367 = vpop.f32.mrf.mxu0
      %v368 = vadd.f32 0.0, %v367
      %369 = vmatmul.f32.gmra.mxu0 %v258
      %v370 = vpop.f32.mrf.mxu0
      %v371 = vadd.f32 0.0, %v370
      %372 = vmatmul.f32.gmra.mxu0 %v261
      %v373 = vpop.f32.mrf.mxu0
      %v374 = vadd.f32 0.0, %v373
      %375 = vmatmul.f32.gmra.mxu0 %v264
      %v376 = vpop.f32.mrf.mxu0
      %v377 = vadd.f32 0.0, %v376
      %378 = vmatmul.f32.gmra.mxu0 %v267
      %v379 = vpop.f32.mrf.mxu0
      %v380 = vadd.f32 0.0, %v379
      %381 = vmatmul.f32.gmra.mxu0 %v270
      %v382 = vpop.f32.mrf.mxu0
      %v383 = vadd.f32 0.0, %v382
      %384 = vmatmul.f32.gmra.mxu0 %v273
      %v385 = vpop.f32.mrf.mxu0
      %v386 = vadd.f32 0.0, %v385
      %387 = vmatmul.f32.gmra.mxu0 %v276
      %v388 = vpop.f32.mrf.mxu0
      %v389 = vadd.f32 0.0, %v388
      %390 = vmatmul.f32.gmra.mxu0 %v279
      %v391 = vpop.f32.mrf.mxu0
      %v392 = vadd.f32 0.0, %v391
      %393 = vmatmul.f32.gmra.mxu0 %v282
      %v394 = vpop.f32.mrf.mxu0
      %v395 = vadd.f32 0.0, %v394
      %396 = vmatmul.f32.gmra.mxu0 %v285
      %v397 = vpop.f32.mrf.mxu0
      %v398 = vadd.f32 0.0, %v397
      %399 = vmatmul.f32.gmra.mxu0 %v288
      %v400 = vpop.f32.mrf.mxu0
      %v401 = vadd.f32 0.0, %v400
      %402 = vmatmul.f32.gmra.mxu0 %v291
      %v403 = vpop.f32.mrf.mxu0
      %v404 = vadd.f32 0.0, %v403
      %405 = vmatmul.f32.gmra.mxu0 %v294
      %v406 = vpop.f32.mrf.mxu0
      %v407 = vadd.f32 0.0, %v406
      %408 = vmatmul.f32.gmra.mxu0 %v297
      %v409 = vpop.f32.mrf.mxu0
      %v410 = vadd.f32 0.0, %v409
      %411 = vmatmul.f32.gmra.mxu0 %v300
      %v412 = vpop.f32.mrf.mxu0
      %v413 = vadd.f32 0.0, %v412
      %414 = vmatmul.f32.gmra.mxu0 %v303
      %v415 = vpop.f32.mrf.mxu0
      %v416 = vadd.f32 0.0, %v415
      %417 = vmatmul.f32.gmra.mxu0 %v306
      %v418 = vpop.f32.mrf.mxu0
      %v419 = vadd.f32 0.0, %v418
      %420 = vmatmul.f32.gmra.mxu0 %v309
      %v421 = vpop.f32.mrf.mxu0
      %v422 = vadd.f32 0.0, %v421
      %423 = vmatmul.f32.gmra.mxu0 %v312
      %v424 = vpop.f32.mrf.mxu0
      %v425 = vadd.f32 0.0, %v424
      %426 = vmatmul.f32.gmra.mxu0 %v315
      %v427 = vpop.f32.mrf.mxu0
      %v428 = vadd.f32 0.0, %v427
      %429 = vmatmul.f32.gmra.mxu0 %v318
      %v430 = vpop.f32.mrf.mxu0
      %v431 = vadd.f32 0.0, %v430
      %432 = vmatmul.f32.gmra.mxu0 %v321
      %v433 = vpop.f32.mrf.mxu0
      %v434 = vadd.f32 0.0, %v433
      %435 = vmatmul.f32.gmra.mxu0 %v324
      %v436 = vpop.f32.mrf.mxu0
      %v437 = vadd.f32 0.0, %v436
      %438 = vmatmul.f32.gmra.mxu0 %v327
      %v439 = vpop.f32.mrf.mxu0
      %v440 = vadd.f32 0.0, %v439
      %441 = vmatmul.f32.gmra.mxu0 %v330
      %v442 = vpop.f32.mrf.mxu0
      %v443 = vadd.f32 0.0, %v442
      %444 = vdwg.mxu0
      %v445 = vld [vmem:[%s2] sm:$0x1]
      %v447 = vperm.slane %v445, 0
      %v449 = vmul.f32 %v350, %v447
      %v450 = vmul.f32 %v353, %v447
      %v451 = vmul.f32 %v356, %v447
      %v452 = vmul.f32 %v359, %v447
      %v453 = vmul.f32 %v362, %v447
      %v454 = vmul.f32 %v365, %v447
      %v455 = vmul.f32 %v368, %v447
      %v456 = vmul.f32 %v371, %v447
      %v457 = vmul.f32 %v374, %v447
      %v458 = vmul.f32 %v377, %v447
      %v459 = vmul.f32 %v380, %v447
      %v460 = vmul.f32 %v383, %v447
      %v461 = vmul.f32 %v386, %v447
      %v462 = vmul.f32 %v389, %v447
      %v463 = vmul.f32 %v392, %v447
      %v464 = vmul.f32 %v395, %v447
      %v465 = vmul.f32 %v398, %v447
      %v466 = vmul.f32 %v401, %v447
      %v467 = vmul.f32 %v404, %v447
      %v468 = vmul.f32 %v407, %v447
      %v469 = vmul.f32 %v410, %v447
      %v470 = vmul.f32 %v413, %v447
      %v471 = vmul.f32 %v416, %v447
      %v472 = vmul.f32 %v419, %v447
      %v473 = vmul.f32 %v422, %v447
      %v474 = vmul.f32 %v425, %v447
      %v475 = vmul.f32 %v428, %v447
      %v476 = vmul.f32 %v431, %v447
      %v477 = vmul.f32 %v434, %v447
      %v478 = vmul.f32 %v437, %v447
      %v479 = vmul.f32 %v440, %v447
      %v480 = vmul.f32 %v443, %v447
      %v481 = vld [vmem:[%s3] sm:$0x1]
      %v483 = vperm.slane %v481, 0
      %v485 = vadd.f32 %v449, %v483
      %v486 = vadd.f32 %v450, %v483
      %v487 = vadd.f32 %v451, %v483
      %v488 = vadd.f32 %v452, %v483
      %v489 = vadd.f32 %v453, %v483
      %v490 = vadd.f32 %v454, %v483
      %v491 = vadd.f32 %v455, %v483
      %v492 = vadd.f32 %v456, %v483
      %v493 = vadd.f32 %v457, %v483
      %v494 = vadd.f32 %v458, %v483
      %v495 = vadd.f32 %v459, %v483
      %v496 = vadd.f32 %v460, %v483
      %v497 = vadd.f32 %v461, %v483
      %v498 = vadd.f32 %v462, %v483
      %v499 = vadd.f32 %v463, %v483
      %v500 = vadd.f32 %v464, %v483
      %v501 = vadd.f32 %v465, %v483
      %v502 = vadd.f32 %v466, %v483
      %v503 = vadd.f32 %v467, %v483
      %v504 = vadd.f32 %v468, %v483
      %v505 = vadd.f32 %v469, %v483
      %v506 = vadd.f32 %v470, %v483
      %v507 = vadd.f32 %v471, %v483
      %v508 = vadd.f32 %v472, %v483
      %v509 = vadd.f32 %v473, %v483
      %v510 = vadd.f32 %v474, %v483
      %v511 = vadd.f32 %v475, %v483
      %v512 = vadd.f32 %v476, %v483
      %v513 = vadd.f32 %v477, %v483
      %v514 = vadd.f32 %v478, %v483
      %v515 = vadd.f32 %v479, %v483
      %v516 = vadd.f32 %v480, %v483
      %v517 = vmax.f32 %v485, 0.0
      %v518 = vmax.f32 %v486, 0.0
      %v519 = vmax.f32 %v487, 0.0
      %v520 = vmax.f32 %v488, 0.0
      %v521 = vmax.f32 %v489, 0.0
      %v522 = vmax.f32 %v490, 0.0
      %v523 = vmax.f32 %v491, 0.0
      %v524 = vmax.f32 %v492, 0.0
      %v525 = vmax.f32 %v493, 0.0
      %v526 = vmax.f32 %v494, 0.0
      %v527 = vmax.f32 %v495, 0.0
      %v528 = vmax.f32 %v496, 0.0
      %v529 = vmax.f32 %v497, 0.0
      %v530 = vmax.f32 %v498, 0.0
      %v531 = vmax.f32 %v499, 0.0
      %v532 = vmax.f32 %v500, 0.0
      %v533 = vmax.f32 %v501, 0.0
      %v534 = vmax.f32 %v502, 0.0
      %v535 = vmax.f32 %v503, 0.0
      %v536 = vmax.f32 %v504, 0.0
      %v537 = vmax.f32 %v505, 0.0
      %v538 = vmax.f32 %v506, 0.0
      %v539 = vmax.f32 %v507, 0.0
      %v540 = vmax.f32 %v508, 0.0
      %v541 = vmax.f32 %v509, 0.0
      %v542 = vmax.f32 %v510, 0.0
      %v543 = vmax.f32 %v511, 0.0
      %v544 = vmax.f32 %v512, 0.0
      %v545 = vmax.f32 %v513, 0.0
      %v546 = vmax.f32 %v514, 0.0
      %v547 = vmax.f32 %v515, 0.0
      %v548 = vmax.f32 %v516, 0.0
      %vm549 = vcmask 31744
      %550 = vst.msk [vmem:[%s199] sm:$0xff] %vm549, %v517
      %551 = vst.msk [vmem:[%s199 + $0x8] sm:$0xff] %vm549, %v518
      %552 = vst.msk [vmem:[%s199 + $0x10] sm:$0xff] %vm549, %v519
      %553 = vst.msk [vmem:[%s199 + $0x18] sm:$0xff] %vm549, %v520
      %554 = vst.msk [vmem:[%s199 + $0x20] sm:$0xff] %vm549, %v521
      %555 = vst.msk [vmem:[%s199 + $0x28] sm:$0xff] %vm549, %v522
      %556 = vst.msk [vmem:[%s199 + $0x30] sm:$0xff] %vm549, %v523
      %557 = vst.msk [vmem:[%s199 + $0x38] sm:$0xff] %vm549, %v524
      %558 = vst.msk [vmem:[%s199 + $0x40] sm:$0xff] %vm549, %v525
      %559 = vst.msk [vmem:[%s199 + $0x48] sm:$0xff] %vm549, %v526
      %560 = vst.msk [vmem:[%s199 + $0x50] sm:$0xff] %vm549, %v527
      %561 = vst.msk [vmem:[%s199 + $0x58] sm:$0xff] %vm549, %v528
      %562 = vst.msk [vmem:[%s199 + $0x60] sm:$0xff] %vm549, %v529
      %563 = vst.msk [vmem:[%s199 + $0x68] sm:$0xff] %vm549, %v530
      %564 = vst.msk [vmem:[%s199 + $0x70] sm:$0xff] %vm549, %v531
      %565 = vst.msk [vmem:[%s199 + $0x78] sm:$0xff] %vm549, %v532
      %566 = vst.msk [vmem:[%s199 + $0x80] sm:$0xff] %vm549, %v533
      %567 = vst.msk [vmem:[%s199 + $0x88] sm:$0xff] %vm549, %v534
      %568 = vst.msk [vmem:[%s199 + $0x90] sm:$0xff] %vm549, %v535
      %569 = vst.msk [vmem:[%s199 + $0x98] sm:$0xff] %vm549, %v536
      %570 = vst.msk [vmem:[%s199 + $0xa0] sm:$0xff] %vm549, %v537
      %571 = vst.msk [vmem:[%s199 + $0xa8] sm:$0xff] %vm549, %v538
      %572 = vst.msk [vmem:[%s199 + $0xb0] sm:$0xff] %vm549, %v539
      %573 = vst.msk [vmem:[%s199 + $0xb8] sm:$0xff] %vm549, %v540
      %574 = vst.msk [vmem:[%s199 + $0xc0] sm:$0xff] %vm549, %v541
      %575 = vst.msk [vmem:[%s199 + $0xc8] sm:$0xff] %vm549, %v542
      %576 = vst.msk [vmem:[%s199 + $0xd0] sm:$0xff] %vm549, %v543
      %577 = vst.msk [vmem:[%s199 + $0xd8] sm:$0xff] %vm549, %v544
      %578 = vst.msk [vmem:[%s199 + $0xe0] sm:$0xff] %vm549, %v545
      %579 = vst.msk [vmem:[%s199 + $0xe8] sm:$0xff] %vm549, %v546
      %580 = vst.msk [vmem:[%s199 + $0xf0] sm:$0xff] %vm549, %v547
      %581 = vst.msk [vmem:[%s199 + $0xf8] sm:$0xff] %vm549, %v548
      %s582 = smul.u32 32, %s15
      %p583 = scmp.lt.s32.totalorder %s582, 63
      %s584 = scalar_select %p583, %s582, 63
      %s585 = smul.addr %s584, 8
      %s586 = scalar_lea.vmem %s4, %s585
      // Predicated region
      $region37: #{bottleneck_forward.3} parent=35 // pred_check
        %p587 = pneg %p122
      $region38: #{bottleneck_forward.3} parent=35 // pred_check_branch
        %589 = sbr.rel (%p587) target = $region40
      $region39: #{bottleneck_forward.3} parent=35 // pred_region
        %s590 = smul.u32 32, %s15
      $region40: #{bottleneck_forward.3} parent=35 // pred_fallthru
        _
    $region36: #{bottleneck_forward.3} parent=5 // pred_fallthru
      _
    %p591 = scmp.le.s32.totalorder 2, %s10
    // Predicated region
    $region41: #{bottleneck_forward.3} parent=5 // pred_check
      %p592 = pneg %p591
    $region42: #{bottleneck_forward.3} parent=5 // pred_check_branch
      %594 = sbr.rel (%p592) target = $region44
    $region43: #{bottleneck_forward.3} parent=5 // pred_region
      %s595 = ssub.s32 %s10, 2
      // Predicated region
      $region45: #{bottleneck_forward.3} parent=43 // pred_check
        %p596 = pneg %p128
      $region46: #{bottleneck_forward.3} parent=43 // pred_check_branch
        %598 = sbr.rel (%p596) target = $region48
      $region47: #{bottleneck_forward.3} parent=43 // pred_region
        %s599 = smul.u32 32, %s16
        %p600 = scmp.lt.s32.totalorder %s599, 63
        %s601 = scalar_select %p600, %s599, 63
        %s602 = smul.addr %s601, 8
        %s603 = scalar_lea.vmem %s4, %s602
      $region48: #{bottleneck_forward.3} parent=43 // pred_fallthru
        _
    $region44: #{bottleneck_forward.3} parent=5 // pred_fallthru
      _
  $region6: #{bottleneck_forward.3} parent=0 // loop_footer
    %s14 = sadd.s32 1, %s10
  $region7: #{bottleneck_forward.3} parent=0 // loop_footer_branch
    %9 = sbr.rel target = $region3
  $region8: #{bottleneck_forward.3} parent=0 // loop_exit
    _

// kernel: bottleneck_forward.4
$region0: #{bottleneck_forward.4}
  #allocation0 [shape = 'u32[]', space=smem, size = 0x4, offset = 0x4, fixed_abs, tag = 'smem constant byte address 0x4 - core index']
  #allocation1 [shape = 'u32[72,128]{1,0:T(1,128)}', space=vmem, size = 0x9000, scoped, tag = 'internal scratch']
  %s0 = inlined_call_operand.vmem [shape: f32[512,36], index: 0, kind: input, shape index: {}]
  %s1 = inlined_call_operand.vmem [shape: f32[36,4], index: 1, kind: input, shape index: {}]
  %s2 = inlined_call_operand.vmem [shape: f32[1,4], index: 2, kind: input, shape index: {}]
  %s3 = inlined_call_operand.vmem [shape: f32[1,4], index: 3, kind: input, shape index: {}]
  %s4 = inlined_call_operand.vmem [shape: f32[512,4], index: 4, kind: output, shape index: {}]
  %s5 = sld [smem:[#allocation0]]
  $region49: #{bottleneck_forward.4} parent=0
    _
  %s7 = ssub.s32 1, %s5
  %s8 = scalar_select 0, %s7, %s5
  loop: start=0, step=1, limit=4
  $region2: #{bottleneck_forward.4} parent=0 // loop_pre_header
    _
  $region3: #{bottleneck_forward.4} parent=0 // loop_header
    %s10 = sphi 0, %s14
    %p11 = scmp.ge.s32.totalorder %s10, 4
    %s20 = sphi 0, %s22
    %s23 = sphi 0, %s20
    %s24 = sphi 0, %s23
    %s40 = sphi 0, %s24
    %s44 = sphi 0, %s44
    %s46 = sphi 0, %s44
    %s47 = sphi 0, %s46
    %s61 = sphi 0, %s47
    %s65 = sphi 0, %s65
    %s67 = sphi 0, %s65
    %s68 = sphi 0, %s67
    %s82 = sphi 0, %s68
    %s86 = sphi 0, %s86
    %s88 = sphi 0, %s86
    %s89 = sphi 0, %s88
    %s103 = sphi 0, %s89
    %s109 = sphi 0, %s111
    %s112 = sphi 0, %s109
    %s113 = sphi 0, %s112
    %s129 = sphi 0, %s113
  $region4: #{bottleneck_forward.4} parent=0 // loop_header_branch
    %13 = sbr.rel (%p11) target = $region8
  $region5: #{bottleneck_forward.4} parent=0 // loop_body
    %s15 = ssub.s32 %s10, 1
    %s16 = ssub.s32 %s10, 2
    %s17 = sadd.s32 %s10, 1
    %s18 = ssub.s32 %s10, %s17
    %p19 = scmp.eq.s32.totalorder %s18, 0
    %s21 = sadd.s32 %s20, 1
    %s22 = scalar_select %p19, %s20, %s21
    %p25 = pneg %p19
    %p26 = scmp.eq.s32.totalorder %s10, 1
    %p27 = por %p25, %p26
    %p28 = scmp.ne.s32.totalorder %s20, %s23
    %p29 = scmp.eq.s32.totalorder %s10, 0
    %p30 = por %p28, %p29
    %p31 = scmp.ne.s32.totalorder %s20, %s23
    %p32 = scmp.eq.s32.totalorder %s15, 1
    %p33 = por %p31, %p32
    %p34 = scmp.ne.s32.totalorder %s23, %s24
    %p35 = scmp.eq.s32.totalorder %s15, 0
    %p36 = por %p34, %p35
    %p37 = scmp.ne.s32.totalorder %s23, %s24
    %p38 = scmp.eq.s32.totalorder %s16, 1
    %p39 = por %p37, %p38
    %p41 = scmp.ne.s32.totalorder %s24, %s40
    %p42 = scmp.eq.s32.totalorder %s16, 0
    %p43 = por %p41, %p42
    %s45 = sadd.s32 %s44, 1
    %p48 = scmp.eq.s32.totalorder %s10, 1
    %p49 = scmp.ne.s32.totalorder %s44, %s46
    %p50 = scmp.eq.s32.totalorder %s10, 0
    %p51 = por %p49, %p50
    %p52 = scmp.ne.s32.totalorder %s44, %s46
    %p53 = scmp.eq.s32.totalorder %s15, 1
    %p54 = por %p52, %p53
    %p55 = scmp.ne.s32.totalorder %s46, %s47
    %p56 = scmp.eq.s32.totalorder %s15, 0
    %p57 = por %p55, %p56
    %p58 = scmp.ne.s32.totalorder %s46, %s47
    %p59 = scmp.eq.s32.totalorder %s16, 1
    %p60 = por %p58, %p59
    %p62 = scmp.ne.s32.totalorder %s47, %s61
    %p63 = scmp.eq.s32.totalorder %s16, 0
    %p64 = por %p62, %p63
    %s66 = sadd.s32 %s65, 1
    %p69 = scmp.eq.s32.totalorder %s10, 1
    %p70 = scmp.ne.s32.totalorder %s65, %s67
    %p71 = scmp.eq.s32.totalorder %s10, 0
    %p72 = por %p70, %p71
    %p73 = scmp.ne.s32.totalorder %s65, %s67
    %p74 = scmp.eq.s32.totalorder %s15, 1
    %p75 = por %p73, %p74
    %p76 = scmp.ne.s32.totalorder %s67, %s68
    %p77 = scmp.eq.s32.totalorder %s15, 0
    %p78 = por %p76, %p77
    %p79 = scmp.ne.s32.totalorder %s67, %s68
    %p80 = scmp.eq.s32.totalorder %s16, 1
    %p81 = por %p79, %p80
    %p83 = scmp.ne.s32.totalorder %s68, %s82
    %p84 = scmp.eq.s32.totalorder %s16, 0
    %p85 = por %p83, %p84
    %s87 = sadd.s32 %s86, 1
    %p90 = scmp.eq.s32.totalorder %s10, 1
    %p91 = scmp.ne.s32.totalorder %s86, %s88
    %p92 = scmp.eq.s32.totalorder %s10, 0
    %p93 = por %p91, %p92
    %p94 = scmp.ne.s32.totalorder %s86, %s88
    %p95 = scmp.eq.s32.totalorder %s15, 1
    %p96 = por %p94, %p95
    %p97 = scmp.ne.s32.totalorder %s88, %s89
    %p98 = scmp.eq.s32.totalorder %s15, 0
    %p99 = por %p97, %p98
    %p100 = scmp.ne.s32.totalorder %s88, %s89
    %p101 = scmp.eq.s32.totalorder %s16, 1
    %p102 = por %p100, %p101
    %p104 = scmp.ne.s32.totalorder %s89, %s103
    %p105 = scmp.eq.s32.totalorder %s16, 0
    %p106 = por %p104, %p105
    %s107 = ssub.s32 %s10, %s17
    %p108 = scmp.eq.s32.totalorder %s107, 0
    %s110 = sadd.s32 %s109, 1
    %s111 = scalar_select %p108, %s109, %s110
    %p114 = pneg %p108
    %p115 = scmp.eq.s32.totalorder %s10, 1
    %p116 = por %p114, %p115
    %p117 = scmp.ne.s32.totalorder %s109, %s112
    %p118 = scmp.eq.s32.totalorder %s10, 0
    %p119 = por %p117, %p118
    %p120 = scmp.ne.s32.totalorder %s109, %s112
    %p121 = scmp.eq.s32.totalorder %s15, 1
    %p122 = por %p120, %p121
    %p123 = scmp.ne.s32.totalorder %s112, %s113
    %p124 = scmp.eq.s32.totalorder %s15, 0
    %p125 = por %p123, %p124
    %p126 = scmp.ne.s32.totalorder %s112, %s113
    %p127 = scmp.eq.s32.totalorder %s16, 1
    %p128 = por %p126, %p127
    %p130 = scmp.ne.s32.totalorder %s113, %s129
    %p131 = scmp.eq.s32.totalorder %s16, 0
    %p132 = por %p130, %p131
    %p133 = scmp.le.s32.totalorder 1, %s10
    %p134 = scmp.lt.s32.totalorder %s10, 3
    %p135 = pnand %p133, %p134
    %p136 = pneg %p135
    // Predicated region
    $region9: #{bottleneck_forward.4} parent=5 // pred_check
      _
    $region10: #{bottleneck_forward.4} parent=5 // pred_check_branch
      %138 = sbr.rel (%p135) target = $region12
    $region11: #{bottleneck_forward.4} parent=5 // pred_region
      %s139 = ssub.s32 %s10, 1
      // Predicated region
      $region13: #{bottleneck_forward.4} parent=11 // pred_check
        %p140 = pneg %p57
      $region14: #{bottleneck_forward.4} parent=11 // pred_check_branch
        %142 = sbr.rel (%p140) target = $region16
      $region15: #{bottleneck_forward.4} parent=11 // pred_region
        _
      $region16: #{bottleneck_forward.4} parent=11 // pred_fallthru
        _
      // Predicated region
      $region17: #{bottleneck_forward.4} parent=11 // pred_check
        %p143 = pneg %p78
      $region18: #{bottleneck_forward.4} parent=11 // pred_check_branch
        %145 = sbr.rel (%p143) target = $region20
      $region19: #{bottleneck_forward.4} parent=11 // pred_region
        _
      $region20: #{bottleneck_forward.4} parent=11 // pred_fallthru
        _
      // Predicated region
      $region21: #{bottleneck_forward.4} parent=11 // pred_check
        %p146 = pneg %p99
      $region22: #{bottleneck_forward.4} parent=11 // pred_check_branch
        %148 = sbr.rel (%p146) target = $region24
      $region23: #{bottleneck_forward.4} parent=11 // pred_region
        _
      $region24: #{bottleneck_forward.4} parent=11 // pred_fallthru
        _
    $region12: #{bottleneck_forward.4} parent=5 // pred_fallthru
      _
    %p149 = scmp.lt.s32.totalorder %s10, 2
    // Predicated region
    $region25: #{bottleneck_forward.4} parent=5 // pred_check
      %p150 = pneg %p149
    $region26: #{bottleneck_forward.4} parent=5 // pred_check_branch
      %152 = sbr.rel (%p150) target = $region28
    $region27: #{bottleneck_forward.4} parent=5 // pred_region
      // Predicated region
      $region29: #{bottleneck_forward.4} parent=27 // pred_check
        %p153 = pneg %p30
      $region30: #{bottleneck_forward.4} parent=27 // pred_check_branch
        %155 = sbr.rel (%p153) target = $region32
      $region31: #{bottleneck_forward.4} parent=27 // pred_region
        %s156 = smul.u32 32, %s10
        %p157 = scmp.lt.s32.totalorder %s156, 63
        %s158 = scalar_select %p157, %s156, 63
        %s159 = smul.addr %s158, 8
        %s160 = scalar_lea.vmem %s0, %s159
        %s161 = smul.u32 32, %s10
      $region32: #{bottleneck_forward.4} parent=27 // pred_fallthru
        _
    $region28: #{bottleneck_forward.4} parent=5 // pred_fallthru
      _
    %p162 = scmp.le.s32.totalorder 1, %s10
    %p163 = scmp.lt.s32.totalorder %s10, 3
    %p164 = pnand %p162, %p163
    %p165 = pneg %p164
    // Predicated region
    $region33: #{bottleneck_forward.4} parent=5 // pred_check
      _
    $region34: #{bottleneck_forward.4} parent=5 // pred_check_branch
      %167 = sbr.rel (%p164) target = $region36
    $region35: #{bottleneck_forward.4} parent=5 // pred_region
      %s168 = ssub.s32 %s10, 1
      %s169 = smul.u32 32, %s15
      %p170 = scmp.lt.s32.totalorder %s169, 63
      %s171 = scalar_select %p170, %s169, 63
      %s172 = smul.addr %s171, 8
      %s173 = scalar_lea.vmem %s0, %s172
      %p174 = pneg %p36
      %p175 = pneg %p33
      %p176 = pneg %p57
      %p177 = pneg %p54
      %p178 = pneg %p78
      %p179 = pneg %p75
      %p180 = pneg %p99
      %p181 = pneg %p96
      %p182 = pneg %p125
      %p183 = pneg %p122
      %s184 = smul.u32 32, %s15
      %p185 = scmp.lt.s32.totalorder %s184, 63
      %s186 = scalar_select %p185, %s184, 63
      %s187 = smul.addr %s186, 8
      %s188 = scalar_lea.vmem %s4, %s187
      %s189 = smul.u32 32, %s15
      %p190 = scmp.lt.s32.totalorder %s189, 63
      %s191 = scalar_select %p190, %s189, 63
      %s192 = smul.addr %s191, 8
      %s193 = scalar_lea.vmem %s0, %s192
      %s194 = smul.u32 32, %s15
      %s195 = smul.u32 32, %s15
      %p196 = scmp.lt.s32.totalorder %s195, 63
      %s197 = scalar_select %p196, %s195, 63
      %s198 = smul.addr %s197, 8
      %s199 = scalar_lea.vmem %s4, %s198
      %s200 = smul.u32 32, %s15
      %v201 = vld [vmem:[%s193] sm:$0xff]
      %v202 = vld [vmem:[%s193 + $0x8] sm:$0xff]
      %v203 = vld [vmem:[%s193 + $0x10] sm:$0xff]
      %v204 = vld [vmem:[%s193 + $0x18] sm:$0xff]
      %v205 = vld [vmem:[%s193 + $0x20] sm:$0xff]
      %v206 = vld [vmem:[%s193 + $0x28] sm:$0xff]
      %v207 = vld [vmem:[%s193 + $0x30] sm:$0xff]
      %v208 = vld [vmem:[%s193 + $0x38] sm:$0xff]
      %v209 = vld [vmem:[%s193 + $0x40] sm:$0xff]
      %v210 = vld [vmem:[%s193 + $0x48] sm:$0xff]
      %v211 = vld [vmem:[%s193 + $0x50] sm:$0xff]
      %v212 = vld [vmem:[%s193 + $0x58] sm:$0xff]
      %v213 = vld [vmem:[%s193 + $0x60] sm:$0xff]
      %v214 = vld [vmem:[%s193 + $0x68] sm:$0xff]
      %v215 = vld [vmem:[%s193 + $0x70] sm:$0xff]
      %v216 = vld [vmem:[%s193 + $0x78] sm:$0xff]
      %v217 = vld [vmem:[%s193 + $0x80] sm:$0xff]
      %v218 = vld [vmem:[%s193 + $0x88] sm:$0xff]
      %v219 = vld [vmem:[%s193 + $0x90] sm:$0xff]
      %v220 = vld [vmem:[%s193 + $0x98] sm:$0xff]
      %v221 = vld [vmem:[%s193 + $0xa0] sm:$0xff]
      %v222 = vld [vmem:[%s193 + $0xa8] sm:$0xff]
      %v223 = vld [vmem:[%s193 + $0xb0] sm:$0xff]
      %v224 = vld [vmem:[%s193 + $0xb8] sm:$0xff]
      %v225 = vld [vmem:[%s193 + $0xc0] sm:$0xff]
      %v226 = vld [vmem:[%s193 + $0xc8] sm:$0xff]
      %v227 = vld [vmem:[%s193 + $0xd0] sm:$0xff]
      %v228 = vld [vmem:[%s193 + $0xd8] sm:$0xff]
      %v229 = vld [vmem:[%s193 + $0xe0] sm:$0xff]
      %v230 = vld [vmem:[%s193 + $0xe8] sm:$0xff]
      %v231 = vld [vmem:[%s193 + $0xf0] sm:$0xff]
      %v232 = vld [vmem:[%s193 + $0xf8] sm:$0xff]
      %v233 = vld [vmem:[%s1] sm:$0xff]
      %v234 = vld [vmem:[%s1 + $0x8] sm:$0xff]
      %v235 = vld [vmem:[%s1 + $0x10] sm:$0xff]
      %v236 = vld [vmem:[%s1 + $0x18] sm:$0xff]
      %v237 = vld [vmem:[%s1 + $0x20] sm:$0xf]
      %vm238 = vcmask 293888
      %v240 = vsel %vm238, %v201, 0
      %v243 = vsel %vm238, %v202, 0
      %v246 = vsel %vm238, %v203, 0
      %v249 = vsel %vm238, %v204, 0
      %v252 = vsel %vm238, %v205, 0
      %v255 = vsel %vm238, %v206, 0
      %v258 = vsel %vm238, %v207, 0
      %v261 = vsel %vm238, %v208, 0
      %v264 = vsel %vm238, %v209, 0
      %v267 = vsel %vm238, %v210, 0
      %v270 = vsel %vm238, %v211, 0
      %v273 = vsel %vm238, %v212, 0
      %v276 = vsel %vm238, %v213, 0
      %v279 = vsel %vm238, %v214, 0
      %v282 = vsel %vm238, %v215, 0
      %v285 = vsel %vm238, %v216, 0
      %v288 = vsel %vm238, %v217, 0
      %v291 = vsel %vm238, %v218, 0
      %v294 = vsel %vm238, %v219, 0
      %v297 = vsel %vm238, %v220, 0
      %v300 = vsel %vm238, %v221, 0
      %v303 = vsel %vm238, %v222, 0
      %v306 = vsel %vm238, %v223, 0
      %v309 = vsel %vm238, %v224, 0
      %v312 = vsel %vm238, %v225, 0
      %v315 = vsel %vm238, %v226, 0
      %v318 = vsel %vm238, %v227, 0
      %v321 = vsel %vm238, %v228, 0
      %v324 = vsel %vm238, %v229, 0
      %v327 = vsel %vm238, %v230, 0
      %v330 = vsel %vm238, %v231, 0
      %v333 = vsel %vm238, %v232, 0
      %vm335 = vcmask 1043456
      %v337 = vsel %vm335, %v237, 0
      %339 = vmatpush.msra.mxu0 0.0
      %340 = vmatpush.msra.mxu0 0.0
      %341 = vmatpush.msra.mxu0 0.0
      %342 = vmatpush.msra.mxu0 0.0
      %343 = vmatpush.msra.mxu0 0.0
      %344 = vmatpush.msra.mxu0 0.0
      %345 = vmatpush.msra.mxu0 0.0
      %346 = vmatpush.msra.mxu0 0.0
      %347 = vmatpush.msra.mxu0 0.0
      %348 = vmatpush.msra.mxu0 0.0
      %349 = vmatpush.msra.mxu0 0.0
      %350 = vmatpush.msra.mxu0 %v337
      %351 = vmatpush.msra.mxu0 %v236
      %352 = vmatpush.msra.mxu0 %v235
      %353 = vmatpush.msra.mxu0 %v234
      %354 = vmatpush.msra.mxu0 %v233
      %355 = vmatmul.f32.gmra.mxu0 %v240
      %v356 = vpop.f32.mrf.mxu0
      %v357 = vadd.f32 0.0, %v356
      %358 = vmatmul.f32.gmra.mxu0 %v243
      %v359 = vpop.f32.mrf.mxu0
      %v360 = vadd.f32 0.0, %v359
      %361 = vmatmul.f32.gmra.mxu0 %v246
      %v362 = vpop.f32.mrf.mxu0
      %v363 = vadd.f32 0.0, %v362
      %364 = vmatmul.f32.gmra.mxu0 %v249
      %v365 = vpop.f32.mrf.mxu0
      %v366 = vadd.f32 0.0, %v365
      %367 = vmatmul.f32.gmra.mxu0 %v252
      %v368 = vpop.f32.mrf.mxu0
      %v369 = vadd.f32 0.0, %v368
      %370 = vmatmul.f32.gmra.mxu0 %v255
      %v371 = vpop.f32.mrf.mxu0
      %v372 = vadd.f32 0.0, %v371
      %373 = vmatmul.f32.gmra.mxu0 %v258
      %v374 = vpop.f32.mrf.mxu0
      %v375 = vadd.f32 0.0, %v374
      %376 = vmatmul.f32.gmra.mxu0 %v261
      %v377 = vpop.f32.mrf.mxu0
      %v378 = vadd.f32 0.0, %v377
      %379 = vmatmul.f32.gmra.mxu0 %v264
      %v380 = vpop.f32.mrf.mxu0
      %v381 = vadd.f32 0.0, %v380
      %382 = vmatmul.f32.gmra.mxu0 %v267
      %v383 = vpop.f32.mrf.mxu0
      %v384 = vadd.f32 0.0, %v383
      %385 = vmatmul.f32.gmra.mxu0 %v270
      %v386 = vpop.f32.mrf.mxu0
      %v387 = vadd.f32 0.0, %v386
      %388 = vmatmul.f32.gmra.mxu0 %v273
      %v389 = vpop.f32.mrf.mxu0
      %v390 = vadd.f32 0.0, %v389
      %391 = vmatmul.f32.gmra.mxu0 %v276
      %v392 = vpop.f32.mrf.mxu0
      %v393 = vadd.f32 0.0, %v392
      %394 = vmatmul.f32.gmra.mxu0 %v279
      %v395 = vpop.f32.mrf.mxu0
      %v396 = vadd.f32 0.0, %v395
      %397 = vmatmul.f32.gmra.mxu0 %v282
      %v398 = vpop.f32.mrf.mxu0
      %v399 = vadd.f32 0.0, %v398
      %400 = vmatmul.f32.gmra.mxu0 %v285
      %v401 = vpop.f32.mrf.mxu0
      %v402 = vadd.f32 0.0, %v401
      %403 = vmatmul.f32.gmra.mxu0 %v288
      %v404 = vpop.f32.mrf.mxu0
      %v405 = vadd.f32 0.0, %v404
      %406 = vmatmul.f32.gmra.mxu0 %v291
      %v407 = vpop.f32.mrf.mxu0
      %v408 = vadd.f32 0.0, %v407
      %409 = vmatmul.f32.gmra.mxu0 %v294
      %v410 = vpop.f32.mrf.mxu0
      %v411 = vadd.f32 0.0, %v410
      %412 = vmatmul.f32.gmra.mxu0 %v297
      %v413 = vpop.f32.mrf.mxu0
      %v414 = vadd.f32 0.0, %v413
      %415 = vmatmul.f32.gmra.mxu0 %v300
      %v416 = vpop.f32.mrf.mxu0
      %v417 = vadd.f32 0.0, %v416
      %418 = vmatmul.f32.gmra.mxu0 %v303
      %v419 = vpop.f32.mrf.mxu0
      %v420 = vadd.f32 0.0, %v419
      %421 = vmatmul.f32.gmra.mxu0 %v306
      %v422 = vpop.f32.mrf.mxu0
      %v423 = vadd.f32 0.0, %v422
      %424 = vmatmul.f32.gmra.mxu0 %v309
      %v425 = vpop.f32.mrf.mxu0
      %v426 = vadd.f32 0.0, %v425
      %427 = vmatmul.f32.gmra.mxu0 %v312
      %v428 = vpop.f32.mrf.mxu0
      %v429 = vadd.f32 0.0, %v428
      %430 = vmatmul.f32.gmra.mxu0 %v315
      %v431 = vpop.f32.mrf.mxu0
      %v432 = vadd.f32 0.0, %v431
      %433 = vmatmul.f32.gmra.mxu0 %v318
      %v434 = vpop.f32.mrf.mxu0
      %v435 = vadd.f32 0.0, %v434
      %436 = vmatmul.f32.gmra.mxu0 %v321
      %v437 = vpop.f32.mrf.mxu0
      %v438 = vadd.f32 0.0, %v437
      %439 = vmatmul.f32.gmra.mxu0 %v324
      %v440 = vpop.f32.mrf.mxu0
      %v441 = vadd.f32 0.0, %v440
      %442 = vmatmul.f32.gmra.mxu0 %v327
      %v443 = vpop.f32.mrf.mxu0
      %v444 = vadd.f32 0.0, %v443
      %445 = vmatmul.f32.gmra.mxu0 %v330
      %v446 = vpop.f32.mrf.mxu0
      %v447 = vadd.f32 0.0, %v446
      %448 = vmatmul.f32.gmra.mxu0 %v333
      %v449 = vpop.f32.mrf.mxu0
      %v450 = vadd.f32 0.0, %v449
      %451 = vdwg.mxu0
      %v452 = vld [vmem:[%s2] sm:$0x1]
      %v454 = vperm.slane %v452, 0
      %v456 = vmul.f32 %v357, %v454
      %v457 = vmul.f32 %v360, %v454
      %v458 = vmul.f32 %v363, %v454
      %v459 = vmul.f32 %v366, %v454
      %v460 = vmul.f32 %v369, %v454
      %v461 = vmul.f32 %v372, %v454
      %v462 = vmul.f32 %v375, %v454
      %v463 = vmul.f32 %v378, %v454
      %v464 = vmul.f32 %v381, %v454
      %v465 = vmul.f32 %v384, %v454
      %v466 = vmul.f32 %v387, %v454
      %v467 = vmul.f32 %v390, %v454
      %v468 = vmul.f32 %v393, %v454
      %v469 = vmul.f32 %v396, %v454
      %v470 = vmul.f32 %v399, %v454
      %v471 = vmul.f32 %v402, %v454
      %v472 = vmul.f32 %v405, %v454
      %v473 = vmul.f32 %v408, %v454
      %v474 = vmul.f32 %v411, %v454
      %v475 = vmul.f32 %v414, %v454
      %v476 = vmul.f32 %v417, %v454
      %v477 = vmul.f32 %v420, %v454
      %v478 = vmul.f32 %v423, %v454
      %v479 = vmul.f32 %v426, %v454
      %v480 = vmul.f32 %v429, %v454
      %v481 = vmul.f32 %v432, %v454
      %v482 = vmul.f32 %v435, %v454
      %v483 = vmul.f32 %v438, %v454
      %v484 = vmul.f32 %v441, %v454
      %v485 = vmul.f32 %v444, %v454
      %v486 = vmul.f32 %v447, %v454
      %v487 = vmul.f32 %v450, %v454
      %v488 = vld [vmem:[%s3] sm:$0x1]
      %v490 = vperm.slane %v488, 0
      %v492 = vadd.f32 %v456, %v490
      %v493 = vadd.f32 %v457, %v490
      %v494 = vadd.f32 %v458, %v490
      %v495 = vadd.f32 %v459, %v490
      %v496 = vadd.f32 %v460, %v490
      %v497 = vadd.f32 %v461, %v490
      %v498 = vadd.f32 %v462, %v490
      %v499 = vadd.f32 %v463, %v490
      %v500 = vadd.f32 %v464, %v490
      %v501 = vadd.f32 %v465, %v490
      %v502 = vadd.f32 %v466, %v490
      %v503 = vadd.f32 %v467, %v490
      %v504 = vadd.f32 %v468, %v490
      %v505 = vadd.f32 %v469, %v490
      %v506 = vadd.f32 %v470, %v490
      %v507 = vadd.f32 %v471, %v490
      %v508 = vadd.f32 %v472, %v490
      %v509 = vadd.f32 %v473, %v490
      %v510 = vadd.f32 %v474, %v490
      %v511 = vadd.f32 %v475, %v490
      %v512 = vadd.f32 %v476, %v490
      %v513 = vadd.f32 %v477, %v490
      %v514 = vadd.f32 %v478, %v490
      %v515 = vadd.f32 %v479, %v490
      %v516 = vadd.f32 %v480, %v490
      %v517 = vadd.f32 %v481, %v490
      %v518 = vadd.f32 %v482, %v490
      %v519 = vadd.f32 %v483, %v490
      %v520 = vadd.f32 %v484, %v490
      %v521 = vadd.f32 %v485, %v490
      %v522 = vadd.f32 %v486, %v490
      %v523 = vadd.f32 %v487, %v490
      %v524 = vmax.f32 %v492, 0.0
      %v525 = vmax.f32 %v493, 0.0
      %v526 = vmax.f32 %v494, 0.0
      %v527 = vmax.f32 %v495, 0.0
      %v528 = vmax.f32 %v496, 0.0
      %v529 = vmax.f32 %v497, 0.0
      %v530 = vmax.f32 %v498, 0.0
      %v531 = vmax.f32 %v499, 0.0
      %v532 = vmax.f32 %v500, 0.0
      %v533 = vmax.f32 %v501, 0.0
      %v534 = vmax.f32 %v502, 0.0
      %v535 = vmax.f32 %v503, 0.0
      %v536 = vmax.f32 %v504, 0.0
      %v537 = vmax.f32 %v505, 0.0
      %v538 = vmax.f32 %v506, 0.0
      %v539 = vmax.f32 %v507, 0.0
      %v540 = vmax.f32 %v508, 0.0
      %v541 = vmax.f32 %v509, 0.0
      %v542 = vmax.f32 %v510, 0.0
      %v543 = vmax.f32 %v511, 0.0
      %v544 = vmax.f32 %v512, 0.0
      %v545 = vmax.f32 %v513, 0.0
      %v546 = vmax.f32 %v514, 0.0
      %v547 = vmax.f32 %v515, 0.0
      %v548 = vmax.f32 %v516, 0.0
      %v549 = vmax.f32 %v517, 0.0
      %v550 = vmax.f32 %v518, 0.0
      %v551 = vmax.f32 %v519, 0.0
      %v552 = vmax.f32 %v520, 0.0
      %v553 = vmax.f32 %v521, 0.0
      %v554 = vmax.f32 %v522, 0.0
      %v555 = vmax.f32 %v523, 0.0
      %vm556 = vcmask 31744
      %557 = vst.msk [vmem:[%s199] sm:$0xff] %vm556, %v524
      %558 = vst.msk [vmem:[%s199 + $0x8] sm:$0xff] %vm556, %v525
      %559 = vst.msk [vmem:[%s199 + $0x10] sm:$0xff] %vm556, %v526
      %560 = vst.msk [vmem:[%s199 + $0x18] sm:$0xff] %vm556, %v527
      %561 = vst.msk [vmem:[%s199 + $0x20] sm:$0xff] %vm556, %v528
      %562 = vst.msk [vmem:[%s199 + $0x28] sm:$0xff] %vm556, %v529
      %563 = vst.msk [vmem:[%s199 + $0x30] sm:$0xff] %vm556, %v530
      %564 = vst.msk [vmem:[%s199 + $0x38] sm:$0xff] %vm556, %v531
      %565 = vst.msk [vmem:[%s199 + $0x40] sm:$0xff] %vm556, %v532
      %566 = vst.msk [vmem:[%s199 + $0x48] sm:$0xff] %vm556, %v533
      %567 = vst.msk [vmem:[%s199 + $0x50] sm:$0xff] %vm556, %v534
      %568 = vst.msk [vmem:[%s199 + $0x58] sm:$0xff] %vm556, %v535
      %569 = vst.msk [vmem:[%s199 + $0x60] sm:$0xff] %vm556, %v536
      %570 = vst.msk [vmem:[%s199 + $0x68] sm:$0xff] %vm556, %v537
      %571 = vst.msk [vmem:[%s199 + $0x70] sm:$0xff] %vm556, %v538
      %572 = vst.msk [vmem:[%s199 + $0x78] sm:$0xff] %vm556, %v539
      %573 = vst.msk [vmem:[%s199 + $0x80] sm:$0xff] %vm556, %v540
      %574 = vst.msk [vmem:[%s199 + $0x88] sm:$0xff] %vm556, %v541
      %575 = vst.msk [vmem:[%s199 + $0x90] sm:$0xff] %vm556, %v542
      %576 = vst.msk [vmem:[%s199 + $0x98] sm:$0xff] %vm556, %v543
      %577 = vst.msk [vmem:[%s199 + $0xa0] sm:$0xff] %vm556, %v544
      %578 = vst.msk [vmem:[%s199 + $0xa8] sm:$0xff] %vm556, %v545
      %579 = vst.msk [vmem:[%s199 + $0xb0] sm:$0xff] %vm556, %v546
      %580 = vst.msk [vmem:[%s199 + $0xb8] sm:$0xff] %vm556, %v547
      %581 = vst.msk [vmem:[%s199 + $0xc0] sm:$0xff] %vm556, %v548
      %582 = vst.msk [vmem:[%s199 + $0xc8] sm:$0xff] %vm556, %v549
      %583 = vst.msk [vmem:[%s199 + $0xd0] sm:$0xff] %vm556, %v550
      %584 = vst.msk [vmem:[%s199 + $0xd8] sm:$0xff] %vm556, %v551
      %585 = vst.msk [vmem:[%s199 + $0xe0] sm:$0xff] %vm556, %v552
      %586 = vst.msk [vmem:[%s199 + $0xe8] sm:$0xff] %vm556, %v553
      %587 = vst.msk [vmem:[%s199 + $0xf0] sm:$0xff] %vm556, %v554
      %588 = vst.msk [vmem:[%s199 + $0xf8] sm:$0xff] %vm556, %v555
      %s589 = smul.u32 32, %s15
      %p590 = scmp.lt.s32.totalorder %s589, 63
      %s591 = scalar_select %p590, %s589, 63
      %s592 = smul.addr %s591, 8
      %s593 = scalar_lea.vmem %s4, %s592
      // Predicated region
      $region37: #{bottleneck_forward.4} parent=35 // pred_check
        %p594 = pneg %p122
      $region38: #{bottleneck_forward.4} parent=35 // pred_check_branch
        %596 = sbr.rel (%p594) target = $region40
      $region39: #{bottleneck_forward.4} parent=35 // pred_region
        %s597 = smul.u32 32, %s15
      $region40: #{bottleneck_forward.4} parent=35 // pred_fallthru
        _
    $region36: #{bottleneck_forward.4} parent=5 // pred_fallthru
      _
    %p598 = scmp.le.s32.totalorder 2, %s10
    // Predicated region
    $region41: #{bottleneck_forward.4} parent=5 // pred_check
      %p599 = pneg %p598
    $region42: #{bottleneck_forward.4} parent=5 // pred_check_branch
      %601 = sbr.rel (%p599) target = $region44
    $region43: #{bottleneck_forward.4} parent=5 // pred_region
      %s602 = ssub.s32 %s10, 2
      // Predicated region
      $region45: #{bottleneck_forward.4} parent=43 // pred_check
        %p603 = pneg %p128
      $region46: #{bottleneck_forward.4} parent=43 // pred_check_branch
        %605 = sbr.rel (%p603) target = $region48
      $region47: #{bottleneck_forward.4} parent=43 // pred_region
        %s606 = smul.u32 32, %s16
        %p607 = scmp.lt.s32.totalorder %s606, 63
        %s608 = scalar_select %p607, %s606, 63
        %s609 = smul.addr %s608, 8
        %s610 = scalar_lea.vmem %s4, %s609
      $region48: #{bottleneck_forward.4} parent=43 // pred_fallthru
        _
    $region44: #{bottleneck_forward.4} parent=5 // pred_fallthru
      _
  $region6: #{bottleneck_forward.4} parent=0 // loop_footer
    %s14 = sadd.s32 1, %s10
  $region7: #{bottleneck_forward.4} parent=0 // loop_footer_branch
    %9 = sbr.rel target = $region3
  $region8: #{bottleneck_forward.4} parent=0 // loop_exit
    _

// kernel: bottleneck_forward.5
$region0: #{bottleneck_forward.5}
  #allocation0 [shape = 'u32[]', space=smem, size = 0x4, offset = 0x4, fixed_abs, tag = 'smem constant byte address 0x4 - core index']
  #allocation1 [shape = 'u32[72,128]{1,0:T(1,128)}', space=vmem, size = 0x9000, scoped, tag = 'internal scratch']
  %s0 = inlined_call_operand.vmem [shape: f32[512,4], index: 0, kind: input, shape index: {}]
  %s1 = inlined_call_operand.vmem [shape: f32[4,16], index: 1, kind: input, shape index: {}]
  %s2 = inlined_call_operand.vmem [shape: f32[1,16], index: 2, kind: input, shape index: {}]
  %s3 = inlined_call_operand.vmem [shape: f32[1,16], index: 3, kind: input, shape index: {}]
  %s4 = inlined_call_operand.vmem [shape: f32[512,16], index: 4, kind: input, shape index: {}]
  %s5 = inlined_call_operand.vmem [shape: f32[512,16], index: 5, kind: output, shape index: {}]
  %s6 = sld [smem:[#allocation0]]
  $region53: #{bottleneck_forward.5} parent=0
    _
  %s8 = ssub.s32 1, %s6
  %s9 = scalar_select 0, %s8, %s6
  loop: start=0, step=1, limit=4
  $region2: #{bottleneck_forward.5} parent=0 // loop_pre_header
    _
  $region3: #{bottleneck_forward.5} parent=0 // loop_header
    %s11 = sphi 0, %s15
    %p12 = scmp.ge.s32.totalorder %s11, 4
    %s21 = sphi 0, %s23
    %s24 = sphi 0, %s21
    %s25 = sphi 0, %s24
    %s41 = sphi 0, %s25
    %s45 = sphi 0, %s45
    %s47 = sphi 0, %s45
    %s48 = sphi 0, %s47
    %s62 = sphi 0, %s48
    %s66 = sphi 0, %s66
    %s68 = sphi 0, %s66
    %s69 = sphi 0, %s68
    %s83 = sphi 0, %s69
    %s87 = sphi 0, %s87
    %s89 = sphi 0, %s87
    %s90 = sphi 0, %s89
    %s104 = sphi 0, %s90
    %s110 = sphi 0, %s112
    %s113 = sphi 0, %s110
    %s114 = sphi 0, %s113
    %s130 = sphi 0, %s114
    %s136 = sphi 0, %s138
    %s139 = sphi 0, %s136
    %s140 = sphi 0, %s139
    %s156 = sphi 0, %s140
  $region4: #{bottleneck_forward.5} parent=0 // loop_header_branch
    %14 = sbr.rel (%p12) target = $region8
  $region5: #{bottleneck_forward.5} parent=0 // loop_body
    %s16 = ssub.s32 %s11, 1
    %s17 = ssub.s32 %s11, 2
    %s18 = sadd.s32 %s11, 1
    %s19 = ssub.s32 %s11, %s18
    %p20 = scmp.eq.s32.totalorder %s19, 0
    %s22 = sadd.s32 %s21, 1
    %s23 = scalar_select %p20, %s21, %s22
    %p26 = pneg %p20
    %p27 = scmp.eq.s32.totalorder %s11, 1
    %p28 = por %p26, %p27
    %p29 = scmp.ne.s32.totalorder %s21, %s24
    %p30 = scmp.eq.s32.totalorder %s11, 0
    %p31 = por %p29, %p30
    %p32 = scmp.ne.s32.totalorder %s21, %s24
    %p33 = scmp.eq.s32.totalorder %s16, 1
    %p34 = por %p32, %p33
    %p35 = scmp.ne.s32.totalorder %s24, %s25
    %p36 = scmp.eq.s32.totalorder %s16, 0
    %p37 = por %p35, %p36
    %p38 = scmp.ne.s32.totalorder %s24, %s25
    %p39 = scmp.eq.s32.totalorder %s17, 1
    %p40 = por %p38, %p39
    %p42 = scmp.ne.s32.totalorder %s25, %s41
    %p43 = scmp.eq.s32.totalorder %s17, 0
    %p44 = por %p42, %p43
    %s46 = sadd.s32 %s45, 1
    %p49 = scmp.eq.s32.totalorder %s11, 1
    %p50 = scmp.ne.s32.totalorder %s45, %s47
    %p51 = scmp.eq.s32.totalorder %s11, 0
    %p52 = por %p50, %p51
    %p53 = scmp.ne.s32.totalorder %s45, %s47
    %p54 = scmp.eq.s32.totalorder %s16, 1
    %p55 = por %p53, %p54
    %p56 = scmp.ne.s32.totalorder %s47, %s48
    %p57 = scmp.eq.s32.totalorder %s16, 0
    %p58 = por %p56, %p57
    %p59 = scmp.ne.s32.totalorder %s47, %s48
    %p60 = scmp.eq.s32.totalorder %s17, 1
    %p61 = por %p59, %p60
    %p63 = scmp.ne.s32.totalorder %s48, %s62
    %p64 = scmp.eq.s32.totalorder %s17, 0
    %p65 = por %p63, %p64
    %s67 = sadd.s32 %s66, 1
    %p70 = scmp.eq.s32.totalorder %s11, 1
    %p71 = scmp.ne.s32.totalorder %s66, %s68
    %p72 = scmp.eq.s32.totalorder %s11, 0
    %p73 = por %p71, %p72
    %p74 = scmp.ne.s32.totalorder %s66, %s68
    %p75 = scmp.eq.s32.totalorder %s16, 1
    %p76 = por %p74, %p75
    %p77 = scmp.ne.s32.totalorder %s68, %s69
    %p78 = scmp.eq.s32.totalorder %s16, 0
    %p79 = por %p77, %p78
    %p80 = scmp.ne.s32.totalorder %s68, %s69
    %p81 = scmp.eq.s32.totalorder %s17, 1
    %p82 = por %p80, %p81
    %p84 = scmp.ne.s32.totalorder %s69, %s83
    %p85 = scmp.eq.s32.totalorder %s17, 0
    %p86 = por %p84, %p85
    %s88 = sadd.s32 %s87, 1
    %p91 = scmp.eq.s32.totalorder %s11, 1
    %p92 = scmp.ne.s32.totalorder %s87, %s89
    %p93 = scmp.eq.s32.totalorder %s11, 0
    %p94 = por %p92, %p93
    %p95 = scmp.ne.s32.totalorder %s87, %s89
    %p96 = scmp.eq.s32.totalorder %s16, 1
    %p97 = por %p95, %p96
    %p98 = scmp.ne.s32.totalorder %s89, %s90
    %p99 = scmp.eq.s32.totalorder %s16, 0
    %p100 = por %p98, %p99
    %p101 = scmp.ne.s32.totalorder %s89, %s90
    %p102 = scmp.eq.s32.totalorder %s17, 1
    %p103 = por %p101, %p102
    %p105 = scmp.ne.s32.totalorder %s90, %s104
    %p106 = scmp.eq.s32.totalorder %s17, 0
    %p107 = por %p105, %p106
    %s108 = ssub.s32 %s11, %s18
    %p109 = scmp.eq.s32.totalorder %s108, 0
    %s111 = sadd.s32 %s110, 1
    %s112 = scalar_select %p109, %s110, %s111
    %p115 = pneg %p109
    %p116 = scmp.eq.s32.totalorder %s11, 1
    %p117 = por %p115, %p116
    %p118 = scmp.ne.s32.totalorder %s110, %s113
    %p119 = scmp.eq.s32.totalorder %s11, 0
    %p120 = por %p118, %p119
    %p121 = scmp.ne.s32.totalorder %s110, %s113
    %p122 = scmp.eq.s32.totalorder %s16, 1
    %p123 = por %p121, %p122
    %p124 = scmp.ne.s32.totalorder %s113, %s114
    %p125 = scmp.eq.s32.totalorder %s16, 0
    %p126 = por %p124, %p125
    %p127 = scmp.ne.s32.totalorder %s113, %s114
    %p128 = scmp.eq.s32.totalorder %s17, 1
    %p129 = por %p127, %p128
    %p131 = scmp.ne.s32.totalorder %s114, %s130
    %p132 = scmp.eq.s32.totalorder %s17, 0
    %p133 = por %p131, %p132
    %s134 = ssub.s32 %s11, %s18
    %p135 = scmp.eq.s32.totalorder %s134, 0
    %s137 = sadd.s32 %s136, 1
    %s138 = scalar_select %p135, %s136, %s137
    %p141 = pneg %p135
    %p142 = scmp.eq.s32.totalorder %s11, 1
    %p143 = por %p141, %p142
    %p144 = scmp.ne.s32.totalorder %s136, %s139
    %p145 = scmp.eq.s32.totalorder %s11, 0
    %p146 = por %p144, %p145
    %p147 = scmp.ne.s32.totalorder %s136, %s139
    %p148 = scmp.eq.s32.totalorder %s16, 1
    %p149 = por %p147, %p148
    %p150 = scmp.ne.s32.totalorder %s139, %s140
    %p151 = scmp.eq.s32.totalorder %s16, 0
    %p152 = por %p150, %p151
    %p153 = scmp.ne.s32.totalorder %s139, %s140
    %p154 = scmp.eq.s32.totalorder %s17, 1
    %p155 = por %p153, %p154
    %p157 = scmp.ne.s32.totalorder %s140, %s156
    %p158 = scmp.eq.s32.totalorder %s17, 0
    %p159 = por %p157, %p158
    %p160 = scmp.le.s32.totalorder 1, %s11
    %p161 = scmp.lt.s32.totalorder %s11, 3
    %p162 = pnand %p160, %p161
    %p163 = pneg %p162
    // Predicated region
    $region9: #{bottleneck_forward.5} parent=5 // pred_check
      _
    $region10: #{bottleneck_forward.5} parent=5 // pred_check_branch
      %165 = sbr.rel (%p162) target = $region12
    $region11: #{bottleneck_forward.5} parent=5 // pred_region
      %s166 = ssub.s32 %s11, 1
      // Predicated region
      $region13: #{bottleneck_forward.5} parent=11 // pred_check
        %p167 = pneg %p58
      $region14: #{bottleneck_forward.5} parent=11 // pred_check_branch
        %169 = sbr.rel (%p167) target = $region16
      $region15: #{bottleneck_forward.5} parent=11 // pred_region
        _
      $region16: #{bottleneck_forward.5} parent=11 // pred_fallthru
        _
      // Predicated region
      $region17: #{bottleneck_forward.5} parent=11 // pred_check
        %p170 = pneg %p79
      $region18: #{bottleneck_forward.5} parent=11 // pred_check_branch
        %172 = sbr.rel (%p170) target = $region20
      $region19: #{bottleneck_forward.5} parent=11 // pred_region
        _
      $region20: #{bottleneck_forward.5} parent=11 // pred_fallthru
        _
      // Predicated region
      $region21: #{bottleneck_forward.5} parent=11 // pred_check
        %p173 = pneg %p100
      $region22: #{bottleneck_forward.5} parent=11 // pred_check_branch
        %175 = sbr.rel (%p173) target = $region24
      $region23: #{bottleneck_forward.5} parent=11 // pred_region
        _
      $region24: #{bottleneck_forward.5} parent=11 // pred_fallthru
        _
    $region12: #{bottleneck_forward.5} parent=5 // pred_fallthru
      _
    %p176 = scmp.lt.s32.totalorder %s11, 2
    // Predicated region
    $region25: #{bottleneck_forward.5} parent=5 // pred_check
      %p177 = pneg %p176
    $region26: #{bottleneck_forward.5} parent=5 // pred_check_branch
      %179 = sbr.rel (%p177) target = $region28
    $region27: #{bottleneck_forward.5} parent=5 // pred_region
      // Predicated region
      $region29: #{bottleneck_forward.5} parent=27 // pred_check
        %p180 = pneg %p31
      $region30: #{bottleneck_forward.5} parent=27 // pred_check_branch
        %182 = sbr.rel (%p180) target = $region32
      $region31: #{bottleneck_forward.5} parent=27 // pred_region
        %s183 = smul.u32 32, %s11
        %p184 = scmp.lt.s32.totalorder %s183, 63
        %s185 = scalar_select %p184, %s183, 63
        %s186 = smul.addr %s185, 8
        %s187 = scalar_lea.vmem %s0, %s186
        %s188 = smul.u32 32, %s11
      $region32: #{bottleneck_forward.5} parent=27 // pred_fallthru
        _
      // Predicated region
      $region33: #{bottleneck_forward.5} parent=27 // pred_check
        %p189 = pneg %p120
      $region34: #{bottleneck_forward.5} parent=27 // pred_check_branch
        %191 = sbr.rel (%p189) target = $region36
      $region35: #{bottleneck_forward.5} parent=27 // pred_region
        %s192 = smul.u32 32, %s11
        %p193 = scmp.lt.s32.totalorder %s192, 63
        %s194 = scalar_select %p193, %s192, 63
        %s195 = smul.addr %s194, 8
        %s196 = scalar_lea.vmem %s4, %s195
        %s197 = smul.u32 32, %s11
      $region36: #{bottleneck_forward.5} parent=27 // pred_fallthru
        _
    $region28: #{bottleneck_forward.5} parent=5 // pred_fallthru
      _
    %p198 = scmp.le.s32.totalorder 1, %s11
    %p199 = scmp.lt.s32.totalorder %s11, 3
    %p200 = pnand %p198, %p199
    %p201 = pneg %p200
    // Predicated region
    $region37: #{bottleneck_forward.5} parent=5 // pred_check
      _
    $region38: #{bottleneck_forward.5} parent=5 // pred_check_branch
      %203 = sbr.rel (%p200) target = $region40
    $region39: #{bottleneck_forward.5} parent=5 // pred_region
      %s204 = ssub.s32 %s11, 1
      %s205 = smul.u32 32, %s16
      %p206 = scmp.lt.s32.totalorder %s205, 63
      %s207 = scalar_select %p206, %s205, 63
      %s208 = smul.addr %s207, 8
      %s209 = scalar_lea.vmem %s0, %s208
      %p210 = pneg %p37
      %p211 = pneg %p34
      %p212 = pneg %p58
      %p213 = pneg %p55
      %p214 = pneg %p79
      %p215 = pneg %p76
      %p216 = pneg %p100
      %p217 = pneg %p97
      %s218 = smul.u32 32, %s16
      %p219 = scmp.lt.s32.totalorder %s218, 63
      %s220 = scalar_select %p219, %s218, 63
      %s221 = smul.addr %s220, 8
      %s222 = scalar_lea.vmem %s4, %s221
      %p223 = pneg %p126
      %p224 = pneg %p123
      %p225 = pneg %p152
      %p226 = pneg %p149
      %s227 = smul.u32 32, %s16
      %p228 = scmp.lt.s32.totalorder %s227, 63
      %s229 = scalar_select %p228, %s227, 63
      %s230 = smul.addr %s229, 8
      %s231 = scalar_lea.vmem %s5, %s230
      %s232 = smul.u32 32, %s16
      %p233 = scmp.lt.s32.totalorder %s232, 63
      %s234 = scalar_select %p233, %s232, 63
      %s235 = smul.addr %s234, 8
      %s236 = scalar_lea.vmem %s0, %s235
      %s237 = smul.u32 32, %s16
      %s238 = smul.u32 32, %s16
      %p239 = scmp.lt.s32.totalorder %s238, 63
      %s240 = scalar_select %p239, %s238, 63
      %s241 = smul.addr %s240, 8
      %s242 = scalar_lea.vmem %s4, %s241
      %s243 = smul.u32 32, %s16
      %s244 = smul.u32 32, %s16
      %p245 = scmp.lt.s32.totalorder %s244, 63
      %s246 = scalar_select %p245, %s244, 63
      %s247 = smul.addr %s246, 8
      %s248 = scalar_lea.vmem %s5, %s247
      %s249 = smul.u32 32, %s16
      %v250 = vld [vmem:[%s236] sm:$0xff]
      %v251 = vld [vmem:[%s236 + $0x8] sm:$0xff]
      %v252 = vld [vmem:[%s236 + $0x10] sm:$0xff]
      %v253 = vld [vmem:[%s236 + $0x18] sm:$0xff]
      %v254 = vld [vmem:[%s236 + $0x20] sm:$0xff]
      %v255 = vld [vmem:[%s236 + $0x28] sm:$0xff]
      %v256 = vld [vmem:[%s236 + $0x30] sm:$0xff]
      %v257 = vld [vmem:[%s236 + $0x38] sm:$0xff]
      %v258 = vld [vmem:[%s236 + $0x40] sm:$0xff]
      %v259 = vld [vmem:[%s236 + $0x48] sm:$0xff]
      %v260 = vld [vmem:[%s236 + $0x50] sm:$0xff]
      %v261 = vld [vmem:[%s236 + $0x58] sm:$0xff]
      %v262 = vld [vmem:[%s236 + $0x60] sm:$0xff]
      %v263 = vld [vmem:[%s236 + $0x68] sm:$0xff]
      %v264 = vld [vmem:[%s236 + $0x70] sm:$0xff]
      %v265 = vld [vmem:[%s236 + $0x78] sm:$0xff]
      %v266 = vld [vmem:[%s236 + $0x80] sm:$0xff]
      %v267 = vld [vmem:[%s236 + $0x88] sm:$0xff]
      %v268 = vld [vmem:[%s236 + $0x90] sm:$0xff]
      %v269 = vld [vmem:[%s236 + $0x98] sm:$0xff]
      %v270 = vld [vmem:[%s236 + $0xa0] sm:$0xff]
      %v271 = vld [vmem:[%s236 + $0xa8] sm:$0xff]
      %v272 = vld [vmem:[%s236 + $0xb0] sm:$0xff]
      %v273 = vld [vmem:[%s236 + $0xb8] sm:$0xff]
      %v274 = vld [vmem:[%s236 + $0xc0] sm:$0xff]
      %v275 = vld [vmem:[%s236 + $0xc8] sm:$0xff]
      %v276 = vld [vmem:[%s236 + $0xd0] sm:$0xff]
      %v277 = vld [vmem:[%s236 + $0xd8] sm:$0xff]
      %v278 = vld [vmem:[%s236 + $0xe0] sm:$0xff]
      %v279 = vld [vmem:[%s236 + $0xe8] sm:$0xff]
      %v280 = vld [vmem:[%s236 + $0xf0] sm:$0xff]
      %v281 = vld [vmem:[%s236 + $0xf8] sm:$0xff]
      %v282 = vld [vmem:[%s1] sm:$0xf]
      %vm283 = vcmask 31744
      %v285 = vsel %vm283, %v250, 0
      %v288 = vsel %vm283, %v251, 0
      %v291 = vsel %vm283, %v252, 0
      %v294 = vsel %vm283, %v253, 0
      %v297 = vsel %vm283, %v254, 0
      %v300 = vsel %vm283, %v255, 0
      %v303 = vsel %vm283, %v256, 0
      %v306 = vsel %vm283, %v257, 0
      %v309 = vsel %vm283, %v258, 0
      %v312 = vsel %vm283, %v259, 0
      %v315 = vsel %vm283, %v260, 0
      %v318 = vsel %vm283, %v261, 0
      %v321 = vsel %vm283, %v262, 0
      %v324 = vsel %vm283, %v263, 0
      %v327 = vsel %vm283, %v264, 0
      %v330 = vsel %vm283, %v265, 0
      %v333 = vsel %vm283, %v266, 0
      %v336 = vsel %vm283, %v267, 0
      %v339 = vsel %vm283, %v268, 0
      %v342 = vsel %vm283, %v269, 0
      %v345 = vsel %vm283, %v270, 0
      %v348 = vsel %vm283, %v271, 0
      %v351 = vsel %vm283, %v272, 0
      %v354 = vsel %vm283, %v273, 0
      %v357 = vsel %vm283, %v274, 0
      %v360 = vsel %vm283, %v275, 0
      %v363 = vsel %vm283, %v276, 0
      %v366 = vsel %vm283, %v277, 0
      %v369 = vsel %vm283, %v278, 0
      %v372 = vsel %vm283, %v279, 0
      %v375 = vsel %vm283, %v280, 0
      %v378 = vsel %vm283, %v281, 0
      %vm380 = vcmask 1043456
      %v382 = vsel %vm380, %v282, 0
      %384 = vmatpush.msra.mxu0 0.0
      %385 = vmatpush.msra.mxu0 0.0
      %386 = vmatpush.msra.mxu0 0.0
      %387 = vmatpush.msra.mxu0 0.0
      %388 = vmatpush.msra.mxu0 0.0
      %389 = vmatpush.msra.mxu0 0.0
      %390 = vmatpush.msra.mxu0 0.0
      %391 = vmatpush.msra.mxu0 0.0
      %392 = vmatpush.msra.mxu0 0.0
      %393 = vmatpush.msra.mxu0 0.0
      %394 = vmatpush.msra.mxu0 0.0
      %395 = vmatpush.msra.mxu0 0.0
      %396 = vmatpush.msra.mxu0 0.0
      %397 = vmatpush.msra.mxu0 0.0
      %398 = vmatpush.msra.mxu0 0.0
      %399 = vmatpush.msra.mxu0 %v382
      %400 = vmatmul.f32.gmra.mxu0 %v285
      %v401 = vpop.f32.mrf.mxu0
      %v402 = vadd.f32 0.0, %v401
      %403 = vmatmul.f32.gmra.mxu0 %v288
      %v404 = vpop.f32.mrf.mxu0
      %v405 = vadd.f32 0.0, %v404
      %406 = vmatmul.f32.gmra.mxu0 %v291
      %v407 = vpop.f32.mrf.mxu0
      %v408 = vadd.f32 0.0, %v407
      %409 = vmatmul.f32.gmra.mxu0 %v294
      %v410 = vpop.f32.mrf.mxu0
      %v411 = vadd.f32 0.0, %v410
      %412 = vmatmul.f32.gmra.mxu0 %v297
      %v413 = vpop.f32.mrf.mxu0
      %v414 = vadd.f32 0.0, %v413
      %415 = vmatmul.f32.gmra.mxu0 %v300
      %v416 = vpop.f32.mrf.mxu0
      %v417 = vadd.f32 0.0, %v416
      %418 = vmatmul.f32.gmra.mxu0 %v303
      %v419 = vpop.f32.mrf.mxu0
      %v420 = vadd.f32 0.0, %v419
      %421 = vmatmul.f32.gmra.mxu0 %v306
      %v422 = vpop.f32.mrf.mxu0
      %v423 = vadd.f32 0.0, %v422
      %424 = vmatmul.f32.gmra.mxu0 %v309
      %v425 = vpop.f32.mrf.mxu0
      %v426 = vadd.f32 0.0, %v425
      %427 = vmatmul.f32.gmra.mxu0 %v312
      %v428 = vpop.f32.mrf.mxu0
      %v429 = vadd.f32 0.0, %v428
      %430 = vmatmul.f32.gmra.mxu0 %v315
      %v431 = vpop.f32.mrf.mxu0
      %v432 = vadd.f32 0.0, %v431
      %433 = vmatmul.f32.gmra.mxu0 %v318
      %v434 = vpop.f32.mrf.mxu0
      %v435 = vadd.f32 0.0, %v434
      %436 = vmatmul.f32.gmra.mxu0 %v321
      %v437 = vpop.f32.mrf.mxu0
      %v438 = vadd.f32 0.0, %v437
      %439 = vmatmul.f32.gmra.mxu0 %v324
      %v440 = vpop.f32.mrf.mxu0
      %v441 = vadd.f32 0.0, %v440
      %442 = vmatmul.f32.gmra.mxu0 %v327
      %v443 = vpop.f32.mrf.mxu0
      %v444 = vadd.f32 0.0, %v443
      %445 = vmatmul.f32.gmra.mxu0 %v330
      %v446 = vpop.f32.mrf.mxu0
      %v447 = vadd.f32 0.0, %v446
      %448 = vmatmul.f32.gmra.mxu0 %v333
      %v449 = vpop.f32.mrf.mxu0
      %v450 = vadd.f32 0.0, %v449
      %451 = vmatmul.f32.gmra.mxu0 %v336
      %v452 = vpop.f32.mrf.mxu0
      %v453 = vadd.f32 0.0, %v452
      %454 = vmatmul.f32.gmra.mxu0 %v339
      %v455 = vpop.f32.mrf.mxu0
      %v456 = vadd.f32 0.0, %v455
      %457 = vmatmul.f32.gmra.mxu0 %v342
      %v458 = vpop.f32.mrf.mxu0
      %v459 = vadd.f32 0.0, %v458
      %460 = vmatmul.f32.gmra.mxu0 %v345
      %v461 = vpop.f32.mrf.mxu0
      %v462 = vadd.f32 0.0, %v461
      %463 = vmatmul.f32.gmra.mxu0 %v348
      %v464 = vpop.f32.mrf.mxu0
      %v465 = vadd.f32 0.0, %v464
      %466 = vmatmul.f32.gmra.mxu0 %v351
      %v467 = vpop.f32.mrf.mxu0
      %v468 = vadd.f32 0.0, %v467
      %469 = vmatmul.f32.gmra.mxu0 %v354
      %v470 = vpop.f32.mrf.mxu0
      %v471 = vadd.f32 0.0, %v470
      %472 = vmatmul.f32.gmra.mxu0 %v357
      %v473 = vpop.f32.mrf.mxu0
      %v474 = vadd.f32 0.0, %v473
      %475 = vmatmul.f32.gmra.mxu0 %v360
      %v476 = vpop.f32.mrf.mxu0
      %v477 = vadd.f32 0.0, %v476
      %478 = vmatmul.f32.gmra.mxu0 %v363
      %v479 = vpop.f32.mrf.mxu0
      %v480 = vadd.f32 0.0, %v479
      %481 = vmatmul.f32.gmra.mxu0 %v366
      %v482 = vpop.f32.mrf.mxu0
      %v483 = vadd.f32 0.0, %v482
      %484 = vmatmul.f32.gmra.mxu0 %v369
      %v485 = vpop.f32.mrf.mxu0
      %v486 = vadd.f32 0.0, %v485
      %487 = vmatmul.f32.gmra.mxu0 %v372
      %v488 = vpop.f32.mrf.mxu0
      %v489 = vadd.f32 0.0, %v488
      %490 = vmatmul.f32.gmra.mxu0 %v375
      %v491 = vpop.f32.mrf.mxu0
      %v492 = vadd.f32 0.0, %v491
      %493 = vmatmul.f32.gmra.mxu0 %v378
      %v494 = vpop.f32.mrf.mxu0
      %v495 = vadd.f32 0.0, %v494
      %496 = vdwg.mxu0
      %v497 = vld [vmem:[%s2] sm:$0x1]
      %v499 = vperm.slane %v497, 0
      %v501 = vmul.f32 %v402, %v499
      %v502 = vmul.f32 %v405, %v499
      %v503 = vmul.f32 %v408, %v499
      %v504 = vmul.f32 %v411, %v499
      %v505 = vmul.f32 %v414, %v499
      %v506 = vmul.f32 %v417, %v499
      %v507 = vmul.f32 %v420, %v499
      %v508 = vmul.f32 %v423, %v499
      %v509 = vmul.f32 %v426, %v499
      %v510 = vmul.f32 %v429, %v499
      %v511 = vmul.f32 %v432, %v499
      %v512 = vmul.f32 %v435, %v499
      %v513 = vmul.f32 %v438, %v499
      %v514 = vmul.f32 %v441, %v499
      %v515 = vmul.f32 %v444, %v499
      %v516 = vmul.f32 %v447, %v499
      %v517 = vmul.f32 %v450, %v499
      %v518 = vmul.f32 %v453, %v499
      %v519 = vmul.f32 %v456, %v499
      %v520 = vmul.f32 %v459, %v499
      %v521 = vmul.f32 %v462, %v499
      %v522 = vmul.f32 %v465, %v499
      %v523 = vmul.f32 %v468, %v499
      %v524 = vmul.f32 %v471, %v499
      %v525 = vmul.f32 %v474, %v499
      %v526 = vmul.f32 %v477, %v499
      %v527 = vmul.f32 %v480, %v499
      %v528 = vmul.f32 %v483, %v499
      %v529 = vmul.f32 %v486, %v499
      %v530 = vmul.f32 %v489, %v499
      %v531 = vmul.f32 %v492, %v499
      %v532 = vmul.f32 %v495, %v499
      %v533 = vld [vmem:[%s3] sm:$0x1]
      %v535 = vperm.slane %v533, 0
      %v537 = vadd.f32 %v501, %v535
      %v538 = vadd.f32 %v502, %v535
      %v539 = vadd.f32 %v503, %v535
      %v540 = vadd.f32 %v504, %v535
      %v541 = vadd.f32 %v505, %v535
      %v542 = vadd.f32 %v506, %v535
      %v543 = vadd.f32 %v507, %v535
      %v544 = vadd.f32 %v508, %v535
      %v545 = vadd.f32 %v509, %v535
      %v546 = vadd.f32 %v510, %v535
      %v547 = vadd.f32 %v511, %v535
      %v548 = vadd.f32 %v512, %v535
      %v549 = vadd.f32 %v513, %v535
      %v550 = vadd.f32 %v514, %v535
      %v551 = vadd.f32 %v515, %v535
      %v552 = vadd.f32 %v516, %v535
      %v553 = vadd.f32 %v517, %v535
      %v554 = vadd.f32 %v518, %v535
      %v555 = vadd.f32 %v519, %v535
      %v556 = vadd.f32 %v520, %v535
      %v557 = vadd.f32 %v521, %v535
      %v558 = vadd.f32 %v522, %v535
      %v559 = vadd.f32 %v523, %v535
      %v560 = vadd.f32 %v524, %v535
      %v561 = vadd.f32 %v525, %v535
      %v562 = vadd.f32 %v526, %v535
      %v563 = vadd.f32 %v527, %v535
      %v564 = vadd.f32 %v528, %v535
      %v565 = vadd.f32 %v529, %v535
      %v566 = vadd.f32 %v530, %v535
      %v567 = vadd.f32 %v531, %v535
      %v568 = vadd.f32 %v532, %v535
      %v569 = vld [vmem:[%s242] sm:$0xff]
      %v570 = vld [vmem:[%s242 + $0x8] sm:$0xff]
      %v571 = vld [vmem:[%s242 + $0x10] sm:$0xff]
      %v572 = vld [vmem:[%s242 + $0x18] sm:$0xff]
      %v573 = vld [vmem:[%s242 + $0x20] sm:$0xff]
      %v574 = vld [vmem:[%s242 + $0x28] sm:$0xff]
      %v575 = vld [vmem:[%s242 + $0x30] sm:$0xff]
      %v576 = vld [vmem:[%s242 + $0x38] sm:$0xff]
      %v577 = vld [vmem:[%s242 + $0x40] sm:$0xff]
      %v578 = vld [vmem:[%s242 + $0x48] sm:$0xff]
      %v579 = vld [vmem:[%s242 + $0x50] sm:$0xff]
      %v580 = vld [vmem:[%s242 + $0x58] sm:$0xff]
      %v581 = vld [vmem:[%s242 + $0x60] sm:$0xff]
      %v582 = vld [vmem:[%s242 + $0x68] sm:$0xff]
      %v583 = vld [vmem:[%s242 + $0x70] sm:$0xff]
      %v584 = vld [vmem:[%s242 + $0x78] sm:$0xff]
      %v585 = vld [vmem:[%s242 + $0x80] sm:$0xff]
      %v586 = vld [vmem:[%s242 + $0x88] sm:$0xff]
      %v587 = vld [vmem:[%s242 + $0x90] sm:$0xff]
      %v588 = vld [vmem:[%s242 + $0x98] sm:$0xff]
      %v589 = vld [vmem:[%s242 + $0xa0] sm:$0xff]
      %v590 = vld [vmem:[%s242 + $0xa8] sm:$0xff]
      %v591 = vld [vmem:[%s242 + $0xb0] sm:$0xff]
      %v592 = vld [vmem:[%s242 + $0xb8] sm:$0xff]
      %v593 = vld [vmem:[%s242 + $0xc0] sm:$0xff]
      %v594 = vld [vmem:[%s242 + $0xc8] sm:$0xff]
      %v595 = vld [vmem:[%s242 + $0xd0] sm:$0xff]
      %v596 = vld [vmem:[%s242 + $0xd8] sm:$0xff]
      %v597 = vld [vmem:[%s242 + $0xe0] sm:$0xff]
      %v598 = vld [vmem:[%s242 + $0xe8] sm:$0xff]
      %v599 = vld [vmem:[%s242 + $0xf0] sm:$0xff]
      %v600 = vld [vmem:[%s242 + $0xf8] sm:$0xff]
      %v601 = vadd.f32 %v537, %v569
      %v602 = vadd.f32 %v538, %v570
      %v603 = vadd.f32 %v539, %v571
      %v604 = vadd.f32 %v540, %v572
      %v605 = vadd.f32 %v541, %v573
      %v606 = vadd.f32 %v542, %v574
      %v607 = vadd.f32 %v543, %v575
      %v608 = vadd.f32 %v544, %v576
      %v609 = vadd.f32 %v545, %v577
      %v610 = vadd.f32 %v546, %v578
      %v611 = vadd.f32 %v547, %v579
      %v612 = vadd.f32 %v548, %v580
      %v613 = vadd.f32 %v549, %v581
      %v614 = vadd.f32 %v550, %v582
      %v615 = vadd.f32 %v551, %v583
      %v616 = vadd.f32 %v552, %v584
      %v617 = vadd.f32 %v553, %v585
      %v618 = vadd.f32 %v554, %v586
      %v619 = vadd.f32 %v555, %v587
      %v620 = vadd.f32 %v556, %v588
      %v621 = vadd.f32 %v557, %v589
      %v622 = vadd.f32 %v558, %v590
      %v623 = vadd.f32 %v559, %v591
      %v624 = vadd.f32 %v560, %v592
      %v625 = vadd.f32 %v561, %v593
      %v626 = vadd.f32 %v562, %v594
      %v627 = vadd.f32 %v563, %v595
      %v628 = vadd.f32 %v564, %v596
      %v629 = vadd.f32 %v565, %v597
      %v630 = vadd.f32 %v566, %v598
      %v631 = vadd.f32 %v567, %v599
      %v632 = vadd.f32 %v568, %v600
      %v633 = vmax.f32 %v601, 0.0
      %v634 = vmax.f32 %v602, 0.0
      %v635 = vmax.f32 %v603, 0.0
      %v636 = vmax.f32 %v604, 0.0
      %v637 = vmax.f32 %v605, 0.0
      %v638 = vmax.f32 %v606, 0.0
      %v639 = vmax.f32 %v607, 0.0
      %v640 = vmax.f32 %v608, 0.0
      %v641 = vmax.f32 %v609, 0.0
      %v642 = vmax.f32 %v610, 0.0
      %v643 = vmax.f32 %v611, 0.0
      %v644 = vmax.f32 %v612, 0.0
      %v645 = vmax.f32 %v613, 0.0
      %v646 = vmax.f32 %v614, 0.0
      %v647 = vmax.f32 %v615, 0.0
      %v648 = vmax.f32 %v616, 0.0
      %v649 = vmax.f32 %v617, 0.0
      %v650 = vmax.f32 %v618, 0.0
      %v651 = vmax.f32 %v619, 0.0
      %v652 = vmax.f32 %v620, 0.0
      %v653 = vmax.f32 %v621, 0.0
      %v654 = vmax.f32 %v622, 0.0
      %v655 = vmax.f32 %v623, 0.0
      %v656 = vmax.f32 %v624, 0.0
      %v657 = vmax.f32 %v625, 0.0
      %v658 = vmax.f32 %v626, 0.0
      %v659 = vmax.f32 %v627, 0.0
      %v660 = vmax.f32 %v628, 0.0
      %v661 = vmax.f32 %v629, 0.0
      %v662 = vmax.f32 %v630, 0.0
      %v663 = vmax.f32 %v631, 0.0
      %v664 = vmax.f32 %v632, 0.0
      %vm665 = vcmask 130048
      %666 = vst.msk [vmem:[%s248] sm:$0xff] %vm665, %v633
      %667 = vst.msk [vmem:[%s248 + $0x8] sm:$0xff] %vm665, %v634
      %668 = vst.msk [vmem:[%s248 + $0x10] sm:$0xff] %vm665, %v635
      %669 = vst.msk [vmem:[%s248 + $0x18] sm:$0xff] %vm665, %v636
      %670 = vst.msk [vmem:[%s248 + $0x20] sm:$0xff] %vm665, %v637
      %671 = vst.msk [vmem:[%s248 + $0x28] sm:$0xff] %vm665, %v638
      %672 = vst.msk [vmem:[%s248 + $0x30] sm:$0xff] %vm665, %v639
      %673 = vst.msk [vmem:[%s248 + $0x38] sm:$0xff] %vm665, %v640
      %674 = vst.msk [vmem:[%s248 + $0x40] sm:$0xff] %vm665, %v641
      %675 = vst.msk [vmem:[%s248 + $0x48] sm:$0xff] %vm665, %v642
      %676 = vst.msk [vmem:[%s248 + $0x50] sm:$0xff] %vm665, %v643
      %677 = vst.msk [vmem:[%s248 + $0x58] sm:$0xff] %vm665, %v644
      %678 = vst.msk [vmem:[%s248 + $0x60] sm:$0xff] %vm665, %v645
      %679 = vst.msk [vmem:[%s248 + $0x68] sm:$0xff] %vm665, %v646
      %680 = vst.msk [vmem:[%s248 + $0x70] sm:$0xff] %vm665, %v647
      %681 = vst.msk [vmem:[%s248 + $0x78] sm:$0xff] %vm665, %v648
      %682 = vst.msk [vmem:[%s248 + $0x80] sm:$0xff] %vm665, %v649
      %683 = vst.msk [vmem:[%s248 + $0x88] sm:$0xff] %vm665, %v650
      %684 = vst.msk [vmem:[%s248 + $0x90] sm:$0xff] %vm665, %v651
      %685 = vst.msk [vmem:[%s248 + $0x98] sm:$0xff] %vm665, %v652
      %686 = vst.msk [vmem:[%s248 + $0xa0] sm:$0xff] %vm665, %v653
      %687 = vst.msk [vmem:[%s248 + $0xa8] sm:$0xff] %vm665, %v654
      %688 = vst.msk [vmem:[%s248 + $0xb0] sm:$0xff] %vm665, %v655
      %689 = vst.msk [vmem:[%s248 + $0xb8] sm:$0xff] %vm665, %v656
      %690 = vst.msk [vmem:[%s248 + $0xc0] sm:$0xff] %vm665, %v657
      %691 = vst.msk [vmem:[%s248 + $0xc8] sm:$0xff] %vm665, %v658
      %692 = vst.msk [vmem:[%s248 + $0xd0] sm:$0xff] %vm665, %v659
      %693 = vst.msk [vmem:[%s248 + $0xd8] sm:$0xff] %vm665, %v660
      %694 = vst.msk [vmem:[%s248 + $0xe0] sm:$0xff] %vm665, %v661
      %695 = vst.msk [vmem:[%s248 + $0xe8] sm:$0xff] %vm665, %v662
      %696 = vst.msk [vmem:[%s248 + $0xf0] sm:$0xff] %vm665, %v663
      %697 = vst.msk [vmem:[%s248 + $0xf8] sm:$0xff] %vm665, %v664
      %s698 = smul.u32 32, %s16
      %p699 = scmp.lt.s32.totalorder %s698, 63
      %s700 = scalar_select %p699, %s698, 63
      %s701 = smul.addr %s700, 8
      %s702 = scalar_lea.vmem %s5, %s701
      // Predicated region
      $region41: #{bottleneck_forward.5} parent=39 // pred_check
        %p703 = pneg %p149
      $region42: #{bottleneck_forward.5} parent=39 // pred_check_branch
        %705 = sbr.rel (%p703) target = $region44
      $region43: #{bottleneck_forward.5} parent=39 // pred_region
        %s706 = smul.u32 32, %s16
      $region44: #{bottleneck_forward.5} parent=39 // pred_fallthru
        _
    $region40: #{bottleneck_forward.5} parent=5 // pred_fallthru
      _
    %p707 = scmp.le.s32.totalorder 2, %s11
    // Predicated region
    $region45: #{bottleneck_forward.5} parent=5 // pred_check
      %p708 = pneg %p707
    $region46: #{bottleneck_forward.5} parent=5 // pred_check_branch
      %710 = sbr.rel (%p708) target = $region48
    $region47: #{bottleneck_forward.5} parent=5 // pred_region
      %s711 = ssub.s32 %s11, 2
      // Predicated region
      $region49: #{bottleneck_forward.5} parent=47 // pred_check
        %p712 = pneg %p155
      $region50: #{bottleneck_forward.5} parent=47 // pred_check_branch
        %714 = sbr.rel (%p712) target = $region52
      $region51: #{bottleneck_forward.5} parent=47 // pred_region
        %s715 = smul.u32 32, %s17
        %p716 = scmp.lt.s32.totalorder %s715, 63
        %s717 = scalar_select %p716, %s715, 63
        %s718 = smul.addr %s717, 8
        %s719 = scalar_lea.vmem %s5, %s718
      $region52: #{bottleneck_forward.5} parent=47 // pred_fallthru
        _
    $region48: #{bottleneck_forward.5} parent=5 // pred_fallthru
      _
  $region6: #{bottleneck_forward.5} parent=0 // loop_footer
    %s15 = sadd.s32 1, %s11
  $region7: #{bottleneck_forward.5} parent=0 // loop_footer_branch
    %10 = sbr.rel target = $region3
  $region8: #{bottleneck_forward.5} parent=0 // loop_exit
    _

</llo_original>
